<compile_context>
chip_gen: v6e
topology: v6e:2x2x1
jax: 0.10.0
libtpu: 0.0.40
codegen_flags: <defaults>
</compile_context>

<pallas_src>
import math

import jax
import jax.numpy as jnp
from jax.experimental import pallas as pl
from jax.experimental.pallas import tpu as pltpu


def _classifier_attn_kernel(
    video_ref,               # (TN, SLV, VD)   compute_dtype
    ques_ref,                # (TN, QD)        compute_dtype
    mask_ref,                # (TN, OUT)       f32
    vp_w_ref, vp_b_ref,      # (VD, H), (1, H)
    qp_w_ref, qp_b_ref,      # (QD, H), (1, H)
    q_w_ref,                 # (H, 2H)
    k_wt_ref,                # (2H, H)  == k_w.T
    v_w_ref,                 # (H, H)
    l1a_w_ref, l1b_w_ref,    # (H, H), (H, H)  == l1_w[:H], l1_w[H:]
    l1_b_ref,                # (1, H)
    l2_w_ref, l2_b_ref,      # (H, OUT), (1, OUT)
    out_ref,                 # (TN, OUT)       f32
):
    tn, slv, vd = video_ref.shape
    h = vp_w_ref.shape[1]
    cdt = vp_w_ref.dtype     # matmul operand dtype (f32 or bf16)

    # --- input projections (one big matmul per weight, f32 accumulation) ---
    vid2 = video_ref[...].reshape(tn * slv, vd)
    vh = jnp.dot(vid2, vp_w_ref[...],
                 preferred_element_type=jnp.float32) + vp_b_ref[...]      # (TN*SLV, H) f32
    qh = jnp.dot(ques_ref[...], qp_w_ref[...],
                 preferred_element_type=jnp.float32) + qp_b_ref[...]      # (TN, H) f32

    # --- attention (reassociated: k / v are never materialized) ---
    q2 = jnp.dot(qh.astype(cdt), q_w_ref[...],
                 preferred_element_type=jnp.float32)                      # (TN, 2H)
    kq = jnp.dot(q2.astype(cdt), k_wt_ref[...],
                 preferred_element_type=jnp.float32)                      # (TN, H)

    vh3 = vh.reshape(tn, slv, h)                                          # (TN, SLV, H)
    scale = 1.0 / math.sqrt(2.0 * h)                                      # 1/sqrt(2H)
    scores = jnp.sum(vh3 * kq[:, None, :], axis=-1) * scale               # (TN, SLV)
    scores = scores - jnp.max(scores, axis=-1, keepdims=True)
    p = jnp.exp(scores)
    p = p / jnp.sum(p, axis=-1, keepdims=True)                            # softmax over SLV

    wctx = jnp.sum(vh3 * p[:, :, None], axis=1)                           # (TN, H)
    ctx = jnp.dot(wctx.astype(cdt), v_w_ref[...],
                  preferred_element_type=jnp.float32)                     # (TN, H)

    # --- classifier head (concat eliminated: l1 split into two matmuls) ---
    h1 = (jnp.dot(ctx.astype(cdt), l1a_w_ref[...],
                  preferred_element_type=jnp.float32)
          + jnp.dot(qh.astype(cdt), l1b_w_ref[...],
                    preferred_element_type=jnp.float32)
          + l1_b_ref[...])                                                # (TN, H)
    h1 = jnp.maximum(h1, 0.0)

    logits = (jnp.dot(h1.astype(cdt), l2_w_ref[...],
                      preferred_element_type=jnp.float32)
              + l2_b_ref[...] + mask_ref[...])                            # (TN, OUT)
    logits = logits - jnp.max(logits, axis=-1, keepdims=True)
    e = jnp.exp(logits)
    out_ref[...] = (e / jnp.sum(e, axis=-1, keepdims=True)).astype(out_ref.dtype)


def classifier_attn_forward(video_enc, ques_enc, ques_mask, output_mask, params,
                            *, tn=128, compute_dtype=jnp.float32):
    """Fused forward pass. tn = samples per grid step (>=128 for production N;
    auto-clamped for tiny N). compute_dtype controls the MXU operand dtype."""
    B, QPV, SLV, VD = video_enc.shape
    QD = ques_enc.shape[-1]
    H = params["vp_w"].shape[1]
    OUT = params["l2_w"].shape[1]
    N = B * QPV
    cdt = compute_dtype

    # Effective block size (multiple of 8 sublanes) and padded sample count.
    tn_eff = max(8, min(int(tn), ((N + 7) // 8) * 8))
    n_pad = ((N + tn_eff - 1) // tn_eff) * tn_eff

    # Glue: flatten (B, QPV) -> N and take ques token 0, exactly as the reference.
    video = video_enc.reshape(N, SLV, VD).astype(cdt)
    ques = ques_enc[:, :, 0, :].reshape(N, QD).astype(cdt)
    mask = output_mask.reshape(N, OUT).astype(jnp.float32)
    # TODO(synk): ques_mask is accepted but never used by the reference forward pass.

    if n_pad != N:
        video = jnp.pad(video, ((0, n_pad - N), (0, 0), (0, 0)))
        ques = jnp.pad(ques, ((0, n_pad - N), (0, 0)))
        mask = jnp.pad(mask, ((0, n_pad - N), (0, 0)))

    def row(b):  # biases stay f32 (added to the f32 accumulator)
        return b.reshape(1, -1).astype(jnp.float32)

    def wmat(w):  # matmul operand weights in compute_dtype
        return w.astype(cdt)

    l1_w = params["l1_w"]
    weights = [
        wmat(params["vp_w"]), row(params["vp_b"]),
        wmat(params["qp_w"]), row(params["qp_b"]),
        wmat(params["q_w"]),
        wmat(params["k_w"].T),          # pre-transposed so kq = q2 @ k_w^T is a plain matmul
        wmat(params["v_w"]),
        wmat(l1_w[:H, :]), wmat(l1_w[H:, :]), row(params["l1_b"]),
        wmat(params["l2_w"]), row(params["l2_b"]),
    ]

    def full_spec(arr):
        nd = arr.ndim
        return pl.BlockSpec(arr.shape, lambda n, _nd=nd: (0,) * _nd)  # resident weights

    in_specs = [
        pl.BlockSpec((tn_eff, SLV, VD), lambda n: (n, 0, 0)),  # TN samples of video
        pl.BlockSpec((tn_eff, QD), lambda n: (n, 0)),          # TN question rows
        pl.BlockSpec((tn_eff, OUT), lambda n: (n, 0)),         # TN output masks
    ] + [full_spec(w) for w in weights]

    out = pl.pallas_call(
        _classifier_attn_kernel,
        out_shape=jax.ShapeDtypeStruct((n_pad, OUT), jnp.float32),
        grid_spec=pltpu.PrefetchScalarGridSpec(
            num_scalar_prefetch=0,
            grid=(n_pad // tn_eff,),
            in_specs=in_specs,
            out_specs=pl.BlockSpec((tn_eff, OUT), lambda n: (n, 0)),
        ),
        compiler_params=pltpu.CompilerParams(
            dimension_semantics=("parallel",)),  # lets v7x shard blocks across its 2 TCs
    )(video, ques, mask, *weights)

    return out[:N].reshape(B, QPV, OUT)


def reference_forward(video_enc, ques_enc, ques_mask, output_mask, params):
    """Pure-JAX mirror of the PyTorch forward, for verification."""
    B, QPV, SLV, _ = video_enc.shape
    H = params["vp_w"].shape[1]
    N = B * QPV

    v_h = video_enc @ params["vp_w"] + params["vp_b"]                  # (B,QPV,SLV,H)
    q_h = ques_enc[:, :, 0, :] @ params["qp_w"] + params["qp_b"]       # (B,QPV,H)

    key = v_h.reshape(N, SLV, H)
    query = q_h.reshape(N, 1, H)
    k = key @ params["k_w"]
    q = query @ params["q_w"]
    v = key @ params["v_w"]
    attn = jnp.sum(k * q, axis=-1) / math.sqrt(2 * H)
    attn = jax.nn.softmax(attn, axis=-1)[..., None]
    ctx = jnp.sum(v * attn, axis=1)                                    # (N, H)

    feat = jnp.concatenate([ctx, q_h.reshape(N, H)], axis=-1)
    h1 = jax.nn.relu(feat @ params["l1_w"] + params["l1_b"])
    logits = h1 @ params["l2_w"] + params["l2_b"] + output_mask.reshape(N, -1)
    return jax.nn.softmax(logits, axis=-1).reshape(B, QPV, -1)


if __name__ == "__main__":
    # Small, forward-consistent shapes (N = B*QPV = 16 -> 2 grid blocks at tn=8).
    B, QPV, SLV, SLQ = 2, 8, 8, 4
    VD, QD = 16, 16          # video_models.out_dim, ques_models.out_dim
    H, OUT = 32, 8           # classifier.hidden_dim, classifier.out_dim

    root = jax.random.PRNGKey(0)
    keys = jax.random.split(root, 16)

    def init(k, shape, scale=0.1):
        return scale * jax.random.normal(k, shape, dtype=jnp.float32)

    params = {
        "vp_w": init(keys[0], (VD, H)),   "vp_b": init(keys[1], (H,)),
        "qp_w": init(keys[2], (QD, H)),   "qp_b": init(keys[3], (H,)),
        "k_w":  init(keys[4], (H, 2 * H)),
        "v_w":  init(keys[5], (H, H)),
        "q_w":  init(keys[6], (H, 2 * H)),
        "l1_w": init(keys[7], (2 * H, H)), "l1_b": init(keys[8], (H,)),
        "l2_w": init(keys[9], (H, OUT)),   "l2_b": init(keys[10], (OUT,)),
    }

    video_enc = jax.random.normal(keys[11], (B, QPV, SLV, VD), dtype=jnp.float32)
    ques_enc = jax.random.normal(keys[12], (B, QPV, SLQ, QD), dtype=jnp.float32)
    ques_mask = jnp.ones((B, QPV, SLQ), dtype=jnp.float32)
    output_mask = jax.random.normal(keys[13], (B, QPV, OUT), dtype=jnp.float32)

    ref = reference_forward(video_enc, ques_enc, ques_mask, output_mask, params)

    # f32 matmul path: tight check against the reference.
    out_f32 = classifier_attn_forward(video_enc, ques_enc, ques_mask, output_mask,
                                      params, tn=8, compute_dtype=jnp.float32)
    out_f32 = jax.block_until_ready(out_f32)
    assert out_f32.shape == (B, QPV, OUT)
    err_f32 = float(jnp.max(jnp.abs(out_f32 - ref)))
    assert jnp.allclose(out_f32, ref, atol=1e-4, rtol=1e-4), f"f32 max_err={err_f32}"

    # bf16 matmul-operand path (f32 accumulation): loose check, as the precision drop
    # from bf16 operands is expected.
    out_bf16 = classifier_attn_forward(video_enc, ques_enc, ques_mask, output_mask,
                                       params, tn=8, compute_dtype=jnp.bfloat16)
    out_bf16 = jax.block_until_ready(out_bf16)
    err_bf16 = float(jnp.max(jnp.abs(out_bf16 - ref)))
    assert jnp.allclose(out_bf16, ref, atol=5e-2, rtol=5e-2), f"bf16 max_err={err_bf16}"

    print("KERNEL_OK")
</pallas_src>

<mosaic_0001>
module attributes {stable_mosaic.version = 11 : i64} {
  func.func @_classifier_attn_kernel(%arg0: i32, %arg1: memref<8x8x16xf32, #tpu.memory_space<vmem>>, %arg2: memref<8x16xf32, #tpu.memory_space<vmem>>, %arg3: memref<8x8xf32, #tpu.memory_space<vmem>>, %arg4: memref<16x32xf32, #tpu.memory_space<vmem>>, %arg5: memref<1x32xf32, #tpu.memory_space<vmem>>, %arg6: memref<16x32xf32, #tpu.memory_space<vmem>>, %arg7: memref<1x32xf32, #tpu.memory_space<vmem>>, %arg8: memref<32x64xf32, #tpu.memory_space<vmem>>, %arg9: memref<64x32xf32, #tpu.memory_space<vmem>>, %arg10: memref<32x32xf32, #tpu.memory_space<vmem>>, %arg11: memref<32x32xf32, #tpu.memory_space<vmem>>, %arg12: memref<32x32xf32, #tpu.memory_space<vmem>>, %arg13: memref<1x32xf32, #tpu.memory_space<vmem>>, %arg14: memref<32x8xf32, #tpu.memory_space<vmem>>, %arg15: memref<1x8xf32, #tpu.memory_space<vmem>>, %arg16: memref<8x8xf32, #tpu.memory_space<vmem>>) attributes {dimension_semantics = [#tpu.dimension_semantics<parallel>], iteration_bounds = array<i64: 2>, scalar_prefetch = 0 : i64, scratch_operands = 0 : i64, tpu.core_type = #tpu.core_type<tc>, window_params = [{transform_indices = @transform_0, window_bounds = array<i64: 8, 8, 16>}, {transform_indices = @transform_1, window_bounds = array<i64: 8, 16>}, {transform_indices = @transform_2, window_bounds = array<i64: 8, 8>}, {pipeline_mode = #tpu.pipeline_mode<synchronous>, transform_indices = @transform_3, window_bounds = array<i64: 16, 32>}, {pipeline_mode = #tpu.pipeline_mode<synchronous>, transform_indices = @transform_4, window_bounds = array<i64: 1, 32>}, {pipeline_mode = #tpu.pipeline_mode<synchronous>, transform_indices = @transform_5, window_bounds = array<i64: 16, 32>}, {pipeline_mode = #tpu.pipeline_mode<synchronous>, transform_indices = @transform_6, window_bounds = array<i64: 1, 32>}, {pipeline_mode = #tpu.pipeline_mode<synchronous>, transform_indices = @transform_7, window_bounds = array<i64: 32, 64>}, {pipeline_mode = #tpu.pipeline_mode<synchronous>, transform_indices = @transform_8, window_bounds = array<i64: 64, 32>}, {pipeline_mode = #tpu.pipeline_mode<synchronous>, transform_indices = @transform_9, window_bounds = array<i64: 32, 32>}, {pipeline_mode = #tpu.pipeline_mode<synchronous>, transform_indices = @transform_10, window_bounds = array<i64: 32, 32>}, {pipeline_mode = #tpu.pipeline_mode<synchronous>, transform_indices = @transform_11, window_bounds = array<i64: 32, 32>}, {pipeline_mode = #tpu.pipeline_mode<synchronous>, transform_indices = @transform_12, window_bounds = array<i64: 1, 32>}, {pipeline_mode = #tpu.pipeline_mode<synchronous>, transform_indices = @transform_13, window_bounds = array<i64: 32, 8>}, {pipeline_mode = #tpu.pipeline_mode<synchronous>, transform_indices = @transform_14, window_bounds = array<i64: 1, 8>}, {transform_indices = @transform_15, window_bounds = array<i64: 8, 8>}]} {
    %c0 = arith.constant 0 : index
    %c0_0 = arith.constant 0 : index
    %c0_1 = arith.constant 0 : index
    %0 = vector.load %arg1[%c0, %c0_0, %c0_1] : memref<8x8x16xf32, #tpu.memory_space<vmem>>, vector<8x8x16xf32>
    %1 = vector.shape_cast %0 : vector<8x8x16xf32> to vector<64x16xf32>
    %c0_2 = arith.constant 0 : index
    %c0_3 = arith.constant 0 : index
    %2 = vector.load %arg4[%c0_2, %c0_3] : memref<16x32xf32, #tpu.memory_space<vmem>>, vector<16x32xf32>
    %cst = arith.constant dense<0.000000e+00> : vector<64x32xf32>
    %3 = tpu.matmul %1, %2, %cst {dimension_numbers = #tpu.dot_dimension_numbers<[1], [0], [0], [1], [0, 0, 1, 1], [], []>} : vector<64x16xf32>, vector<16x32xf32>, vector<64x32xf32> -> vector<64x32xf32>
    %c0_4 = arith.constant 0 : index
    %c0_5 = arith.constant 0 : index
    %4 = vector.load %arg5[%c0_4, %c0_5] : memref<1x32xf32, #tpu.memory_space<vmem>>, vector<1x32xf32>
    %5 = vector.broadcast %4 : vector<1x32xf32> to vector<64x32xf32>
    %6 = arith.addf %3, %5 : vector<64x32xf32>
    %c0_6 = arith.constant 0 : index
    %c0_7 = arith.constant 0 : index
    %7 = vector.load %arg2[%c0_6, %c0_7] : memref<8x16xf32, #tpu.memory_space<vmem>>, vector<8x16xf32>
    %c0_8 = arith.constant 0 : index
    %c0_9 = arith.constant 0 : index
    %8 = vector.load %arg6[%c0_8, %c0_9] : memref<16x32xf32, #tpu.memory_space<vmem>>, vector<16x32xf32>
    %cst_10 = arith.constant dense<0.000000e+00> : vector<8x32xf32>
    %9 = tpu.matmul %7, %8, %cst_10 {dimension_numbers = #tpu.dot_dimension_numbers<[1], [0], [0], [1], [0, 0, 1, 1], [], []>} : vector<8x16xf32>, vector<16x32xf32>, vector<8x32xf32> -> vector<8x32xf32>
    %c0_11 = arith.constant 0 : index
    %c0_12 = arith.constant 0 : index
    %10 = vector.load %arg7[%c0_11, %c0_12] : memref<1x32xf32, #tpu.memory_space<vmem>>, vector<1x32xf32>
    %11 = vector.broadcast %10 : vector<1x32xf32> to vector<8x32xf32>
    %12 = arith.addf %9, %11 : vector<8x32xf32>
    %c0_13 = arith.constant 0 : index
    %c0_14 = arith.constant 0 : index
    %13 = vector.load %arg8[%c0_13, %c0_14] : memref<32x64xf32, #tpu.memory_space<vmem>>, vector<32x64xf32>
    %cst_15 = arith.constant dense<0.000000e+00> : vector<8x64xf32>
    %14 = tpu.matmul %12, %13, %cst_15 {dimension_numbers = #tpu.dot_dimension_numbers<[1], [0], [0], [1], [0, 0, 1, 1], [], []>} : vector<8x32xf32>, vector<32x64xf32>, vector<8x64xf32> -> vector<8x64xf32>
    %c0_16 = arith.constant 0 : index
    %c0_17 = arith.constant 0 : index
    %15 = vector.load %arg9[%c0_16, %c0_17] : memref<64x32xf32, #tpu.memory_space<vmem>>, vector<64x32xf32>
    %cst_18 = arith.constant dense<0.000000e+00> : vector<8x32xf32>
    %16 = tpu.matmul %14, %15, %cst_18 {dimension_numbers = #tpu.dot_dimension_numbers<[1], [0], [0], [1], [0, 0, 1, 1], [], []>} : vector<8x64xf32>, vector<64x32xf32>, vector<8x32xf32> -> vector<8x32xf32>
    %17 = vector.shape_cast %6 : vector<64x32xf32> to vector<8x8x32xf32>
    %18 = vector.shape_cast %16 : vector<8x32xf32> to vector<8x1x32xf32>
    %19 = vector.broadcast %18 : vector<8x1x32xf32> to vector<8x8x32xf32>
    %20 = arith.mulf %17, %19 : vector<8x8x32xf32>
    %cst_19 = arith.constant dense<0.000000e+00> : vector<8x8xf32>
    %21 = vector.multi_reduction <add>, %20, %cst_19 [2] : vector<8x8x32xf32> to vector<8x8xf32>
    %cst_20 = arith.constant 1.250000e-01 : f32
    %22 = vector.broadcast %cst_20 : f32 to vector<8x8xf32>
    %23 = arith.mulf %21, %22 : vector<8x8xf32>
    %cst_21 = arith.constant dense<0xFF800000> : vector<8xf32>
    %24 = vector.multi_reduction <maximumf>, %23, %cst_21 [1] : vector<8x8xf32> to vector<8xf32>
    %25 = vector.shape_cast %24 : vector<8xf32> to vector<8x1xf32>
    %26 = vector.broadcast %25 : vector<8x1xf32> to vector<8x8xf32>
    %27 = arith.subf %23, %26 : vector<8x8xf32>
    %28 = math.exp %27 : vector<8x8xf32>
    %cst_22 = arith.constant dense<0.000000e+00> : vector<8xf32>
    %29 = vector.multi_reduction <add>, %28, %cst_22 [1] : vector<8x8xf32> to vector<8xf32>
    %30 = vector.shape_cast %29 : vector<8xf32> to vector<8x1xf32>
    %31 = vector.broadcast %30 : vector<8x1xf32> to vector<8x8xf32>
    %32 = arith.divf %28, %31 : vector<8x8xf32>
    %33 = vector.shape_cast %32 : vector<8x8xf32> to vector<8x8x1xf32>
    %34 = vector.broadcast %33 : vector<8x8x1xf32> to vector<8x8x32xf32>
    %35 = arith.mulf %17, %34 : vector<8x8x32xf32>
    %cst_23 = arith.constant dense<0.000000e+00> : vector<8x32xf32>
    %36 = vector.multi_reduction <add>, %35, %cst_23 [1] : vector<8x8x32xf32> to vector<8x32xf32>
    %c0_24 = arith.constant 0 : index
    %c0_25 = arith.constant 0 : index
    %37 = vector.load %arg10[%c0_24, %c0_25] : memref<32x32xf32, #tpu.memory_space<vmem>>, vector<32x32xf32>
    %cst_26 = arith.constant dense<0.000000e+00> : vector<8x32xf32>
    %38 = tpu.matmul %36, %37, %cst_26 {dimension_numbers = #tpu.dot_dimension_numbers<[1], [0], [0], [1], [0, 0, 1, 1], [], []>} : vector<8x32xf32>, vector<32x32xf32>, vector<8x32xf32> -> vector<8x32xf32>
    %c0_27 = arith.constant 0 : index
    %c0_28 = arith.constant 0 : index
    %39 = vector.load %arg11[%c0_27, %c0_28] : memref<32x32xf32, #tpu.memory_space<vmem>>, vector<32x32xf32>
    %cst_29 = arith.constant dense<0.000000e+00> : vector<8x32xf32>
    %40 = tpu.matmul %38, %39, %cst_29 {dimension_numbers = #tpu.dot_dimension_numbers<[1], [0], [0], [1], [0, 0, 1, 1], [], []>} : vector<8x32xf32>, vector<32x32xf32>, vector<8x32xf32> -> vector<8x32xf32>
    %c0_30 = arith.constant 0 : index
    %c0_31 = arith.constant 0 : index
    %41 = vector.load %arg12[%c0_30, %c0_31] : memref<32x32xf32, #tpu.memory_space<vmem>>, vector<32x32xf32>
    %cst_32 = arith.constant dense<0.000000e+00> : vector<8x32xf32>
    %42 = tpu.matmul %12, %41, %cst_32 {dimension_numbers = #tpu.dot_dimension_numbers<[1], [0], [0], [1], [0, 0, 1, 1], [], []>} : vector<8x32xf32>, vector<32x32xf32>, vector<8x32xf32> -> vector<8x32xf32>
    %43 = arith.addf %40, %42 : vector<8x32xf32>
    %c0_33 = arith.constant 0 : index
    %c0_34 = arith.constant 0 : index
    %44 = vector.load %arg13[%c0_33, %c0_34] : memref<1x32xf32, #tpu.memory_space<vmem>>, vector<1x32xf32>
    %45 = vector.broadcast %44 : vector<1x32xf32> to vector<8x32xf32>
    %46 = arith.addf %43, %45 : vector<8x32xf32>
    %cst_35 = arith.constant 0.000000e+00 : f32
    %47 = vector.broadcast %cst_35 : f32 to vector<8x32xf32>
    %48 = arith.maximumf %46, %47 : vector<8x32xf32>
    %c0_36 = arith.constant 0 : index
    %c0_37 = arith.constant 0 : index
    %49 = vector.load %arg14[%c0_36, %c0_37] : memref<32x8xf32, #tpu.memory_space<vmem>>, vector<32x8xf32>
    %cst_38 = arith.constant dense<0.000000e+00> : vector<8x8xf32>
    %50 = tpu.matmul %48, %49, %cst_38 {dimension_numbers = #tpu.dot_dimension_numbers<[1], [0], [0], [1], [0, 0, 1, 1], [], []>} : vector<8x32xf32>, vector<32x8xf32>, vector<8x8xf32> -> vector<8x8xf32>
    %c0_39 = arith.constant 0 : index
    %c0_40 = arith.constant 0 : index
    %51 = vector.load %arg15[%c0_39, %c0_40] : memref<1x8xf32, #tpu.memory_space<vmem>>, vector<1x8xf32>
    %52 = vector.broadcast %51 : vector<1x8xf32> to vector<8x8xf32>
    %53 = arith.addf %50, %52 : vector<8x8xf32>
    %c0_41 = arith.constant 0 : index
    %c0_42 = arith.constant 0 : index
    %54 = vector.load %arg3[%c0_41, %c0_42] : memref<8x8xf32, #tpu.memory_space<vmem>>, vector<8x8xf32>
    %55 = arith.addf %53, %54 : vector<8x8xf32>
    %cst_43 = arith.constant dense<0xFF800000> : vector<8xf32>
    %56 = vector.multi_reduction <maximumf>, %55, %cst_43 [1] : vector<8x8xf32> to vector<8xf32>
    %57 = vector.shape_cast %56 : vector<8xf32> to vector<8x1xf32>
    %58 = vector.broadcast %57 : vector<8x1xf32> to vector<8x8xf32>
    %59 = arith.subf %55, %58 : vector<8x8xf32>
    %60 = math.exp %59 : vector<8x8xf32>
    %cst_44 = arith.constant dense<0.000000e+00> : vector<8xf32>
    %61 = vector.multi_reduction <add>, %60, %cst_44 [1] : vector<8x8xf32> to vector<8xf32>
    %62 = vector.shape_cast %61 : vector<8xf32> to vector<8x1xf32>
    %63 = vector.broadcast %62 : vector<8x1xf32> to vector<8x8xf32>
    %64 = arith.divf %60, %63 : vector<8x8xf32>
    %c0_45 = arith.constant 0 : index
    %c0_46 = arith.constant 0 : index
    %65 = vector.load %arg16[%c0_45, %c0_46] : memref<8x8xf32, #tpu.memory_space<vmem>>, vector<8x8xf32>
    tpu.vector_store %arg16[%c0_45, %c0_46], %64 {strides = array<i32>} : memref<8x8xf32, #tpu.memory_space<vmem>>, vector<8x8xf32>,
    return
  }
  func.func @transform_0(%arg0: i32) -> (i32, i32, i32) {
    %c0_i32 = arith.constant 0 : i32
    %c0_i32_0 = arith.constant 0 : i32
    %c0_i32_1 = arith.constant 0 : i32
    return %arg0, %c0_i32, %c0_i32_0 : i32, i32, i32
  }
  func.func @transform_1(%arg0: i32) -> (i32, i32) {
    %c0_i32 = arith.constant 0 : i32
    %c0_i32_0 = arith.constant 0 : i32
    return %arg0, %c0_i32 : i32, i32
  }
  func.func @transform_2(%arg0: i32) -> (i32, i32) {
    %c0_i32 = arith.constant 0 : i32
    %c0_i32_0 = arith.constant 0 : i32
    return %arg0, %c0_i32 : i32, i32
  }
  func.func @transform_3(%arg0: i32) -> (i32, i32) {
    %c0_i32 = arith.constant 0 : i32
    %c0_i32_0 = arith.constant 0 : i32
    %c0_i32_1 = arith.constant 0 : i32
    return %c0_i32, %c0_i32_0 : i32, i32
  }
  func.func @transform_4(%arg0: i32) -> (i32, i32) {
    %c0_i32 = arith.constant 0 : i32
    %c0_i32_0 = arith.constant 0 : i32
    %c0_i32_1 = arith.constant 0 : i32
    return %c0_i32, %c0_i32_0 : i32, i32
  }
  func.func @transform_5(%arg0: i32) -> (i32, i32) {
    %c0_i32 = arith.constant 0 : i32
    %c0_i32_0 = arith.constant 0 : i32
    %c0_i32_1 = arith.constant 0 : i32
    return %c0_i32, %c0_i32_0 : i32, i32
  }
  func.func @transform_6(%arg0: i32) -> (i32, i32) {
    %c0_i32 = arith.constant 0 : i32
    %c0_i32_0 = arith.constant 0 : i32
    %c0_i32_1 = arith.constant 0 : i32
    return %c0_i32, %c0_i32_0 : i32, i32
  }
  func.func @transform_7(%arg0: i32) -> (i32, i32) {
    %c0_i32 = arith.constant 0 : i32
    %c0_i32_0 = arith.constant 0 : i32
    %c0_i32_1 = arith.constant 0 : i32
    return %c0_i32, %c0_i32_0 : i32, i32
  }
  func.func @transform_8(%arg0: i32) -> (i32, i32) {
    %c0_i32 = arith.constant 0 : i32
    %c0_i32_0 = arith.constant 0 : i32
    %c0_i32_1 = arith.constant 0 : i32
    return %c0_i32, %c0_i32_0 : i32, i32
  }
  func.func @transform_9(%arg0: i32) -> (i32, i32) {
    %c0_i32 = arith.constant 0 : i32
    %c0_i32_0 = arith.constant 0 : i32
    %c0_i32_1 = arith.constant 0 : i32
    return %c0_i32, %c0_i32_0 : i32, i32
  }
  func.func @transform_10(%arg0: i32) -> (i32, i32) {
    %c0_i32 = arith.constant 0 : i32
    %c0_i32_0 = arith.constant 0 : i32
    %c0_i32_1 = arith.constant 0 : i32
    return %c0_i32, %c0_i32_0 : i32, i32
  }
  func.func @transform_11(%arg0: i32) -> (i32, i32) {
    %c0_i32 = arith.constant 0 : i32
    %c0_i32_0 = arith.constant 0 : i32
    %c0_i32_1 = arith.constant 0 : i32
    return %c0_i32, %c0_i32_0 : i32, i32
  }
  func.func @transform_12(%arg0: i32) -> (i32, i32) {
    %c0_i32 = arith.constant 0 : i32
    %c0_i32_0 = arith.constant 0 : i32
    %c0_i32_1 = arith.constant 0 : i32
    return %c0_i32, %c0_i32_0 : i32, i32
  }
  func.func @transform_13(%arg0: i32) -> (i32, i32) {
    %c0_i32 = arith.constant 0 : i32
    %c0_i32_0 = arith.constant 0 : i32
    %c0_i32_1 = arith.constant 0 : i32
    return %c0_i32, %c0_i32_0 : i32, i32
  }
  func.func @transform_14(%arg0: i32) -> (i32, i32) {
    %c0_i32 = arith.constant 0 : i32
    %c0_i32_0 = arith.constant 0 : i32
    %c0_i32_1 = arith.constant 0 : i32
    return %c0_i32, %c0_i32_0 : i32, i32
  }
  func.func @transform_15(%arg0: i32) -> (i32, i32) {
    %c0_i32 = arith.constant 0 : i32
    %c0_i32_0 = arith.constant 0 : i32
    return %arg0, %c0_i32 : i32, i32
  }
}

</mosaic_0001>

<llo_original>
// kernel: tpu_custom_call.1
$region0: #{tpu_custom_call.1}
  #allocation0 [shape = 'u32[]', space=smem, size = 0x4, offset = 0x4, fixed_abs, tag = 'smem constant byte address 0x4 - core index']
  #allocation1 [shape = 'u32[144,128]{1,0:T(1,128)}', space=vmem, size = 0x12000, scoped, tag = 'internal scratch']
  %s0 = inlined_call_operand.vmem [shape: f32[16,8,16], index: 0, kind: input, shape index: {}]
  %s1 = inlined_call_operand.hbm [shape: f32[16,16], index: 1, kind: input, shape index: {}]
  %s2 = inlined_call_operand.vmem [shape: f32[16,8], index: 2, kind: input, shape index: {}]
  %s3 = inlined_call_operand.hbm [shape: f32[16,32], index: 3, kind: input, shape index: {}]
  %s4 = inlined_call_operand.vmem [shape: f32[1,32], index: 4, kind: input, shape index: {}]
  %s5 = inlined_call_operand.hbm [shape: f32[16,32], index: 5, kind: input, shape index: {}]
  %s6 = inlined_call_operand.vmem [shape: f32[1,32], index: 6, kind: input, shape index: {}]
  %s7 = inlined_call_operand.vmem [shape: f32[32,64], index: 7, kind: input, shape index: {}]
  %s8 = inlined_call_operand.vmem [shape: f32[64,32], index: 8, kind: input, shape index: {}]
  %s9 = inlined_call_operand.hbm [shape: f32[32,32], index: 9, kind: input, shape index: {}]
  %s10 = inlined_call_operand.hbm [shape: f32[32,32], index: 10, kind: input, shape index: {}]
  %s11 = inlined_call_operand.hbm [shape: f32[32,32], index: 11, kind: input, shape index: {}]
  %s12 = inlined_call_operand.vmem [shape: f32[1,32], index: 12, kind: input, shape index: {}]
  %s13 = inlined_call_operand.vmem [shape: f32[32,8], index: 13, kind: input, shape index: {}]
  %s14 = inlined_call_operand.vmem [shape: f32[1,8], index: 14, kind: input, shape index: {}]
  %s15 = inlined_call_operand.vmem [shape: f32[16,8], index: 15, kind: output, shape index: {}]
  %s16 = sld [smem:[#allocation0]]
  $region117: #{tpu_custom_call.1} parent=0
    _
  %s18 = ssub.s32 1, %s16
  %s19 = scalar_select 0, %s18, %s16
  $region1: #{tpu_custom_call.1} parent=0
    #allocation2 [shape = 'u8[8192]{0}', space=vmem, size = 0x2000, scoped, tag = 'input window, operand 1']
    #allocation3 [shape = 's32[2]{0}', space=sflag, size = 0x8, scoped, tag = 'scoped memory for tpu_custom_call.1']
    #allocation4 [shape = 'u8[8192]{0}', space=vmem, size = 0x2000, scoped, tag = 'input window, operand 3, single buffered']
    #allocation5 [shape = 's32[1]{0}', space=sflag, size = 0x4, scoped, tag = 'scoped memory for tpu_custom_call.1']
    #allocation6 [shape = 'u8[8192]{0}', space=vmem, size = 0x2000, scoped, tag = 'input window, operand 5, single buffered']
    #allocation7 [shape = 'u8[16384]{0}', space=vmem, size = 0x4000, scoped, tag = 'input window, operand 9, single buffered']
    #allocation8 [shape = 's32[1]{0}', space=sflag, size = 0x4, scoped, tag = 'scoped memory for tpu_custom_call.1']
    #allocation9 [shape = 'u8[16384]{0}', space=vmem, size = 0x4000, scoped, tag = 'input window, operand 10, single buffered']
    #allocation10 [shape = 'u8[16384]{0}', space=vmem, size = 0x4000, scoped, tag = 'input window, operand 11, single buffered']
    #allocation11 [shape = 's32[1]{0}', space=sflag, size = 0x4, scoped, tag = 'scoped memory for tpu_custom_call.1']
    %20 = vsyncpa [#allocation3], 0
    %s21 = scalar_lea.sflag [#allocation3], 1
    %22 = vsyncpa %s21, 0
    %23 = vsyncpa [#allocation5], 0
    %24 = vsyncpa [#allocation8], 0
    %25 = vsyncpa [#allocation11], 0
    loop: start=0, step=1, limit=4
    $region2: #{tpu_custom_call.1} parent=1 // loop_pre_header
      _
    $region3: #{tpu_custom_call.1} parent=1 // loop_header
      %s27 = sphi 0, %s31
      %p28 = scmp.ge.s32.totalorder %s27, 4
      %s37 = sphi 0, %s39
      %s40 = sphi 0, %s37
      %s41 = sphi 0, %s40
      %s57 = sphi 0, %s41
      %s63 = sphi 0, %s65
      %s66 = sphi 0, %s63
      %s67 = sphi 0, %s66
      %s83 = sphi 0, %s67
      %s89 = sphi 0, %s91
      %s92 = sphi 0, %s89
      %s93 = sphi 0, %s92
      %s109 = sphi 0, %s93
      %s113 = sphi 0, %s113
      %s115 = sphi 0, %s113
      %s116 = sphi 0, %s115
      %s130 = sphi 0, %s116
      %s134 = sphi 0, %s134
      %s136 = sphi 0, %s134
      %s137 = sphi 0, %s136
      %s151 = sphi 0, %s137
      %s155 = sphi 0, %s155
      %s157 = sphi 0, %s155
      %s158 = sphi 0, %s157
      %s172 = sphi 0, %s158
      %s176 = sphi 0, %s176
      %s178 = sphi 0, %s176
      %s179 = sphi 0, %s178
      %s193 = sphi 0, %s179
      %s197 = sphi 0, %s197
      %s199 = sphi 0, %s197
      %s200 = sphi 0, %s199
      %s214 = sphi 0, %s200
      %s218 = sphi 0, %s218
      %s220 = sphi 0, %s218
      %s221 = sphi 0, %s220
      %s235 = sphi 0, %s221
      %s239 = sphi 0, %s239
      %s241 = sphi 0, %s239
      %s242 = sphi 0, %s241
      %s256 = sphi 0, %s242
      %s260 = sphi 0, %s260
      %s262 = sphi 0, %s260
      %s263 = sphi 0, %s262
      %s277 = sphi 0, %s263
      %s281 = sphi 0, %s281
      %s283 = sphi 0, %s281
      %s284 = sphi 0, %s283
      %s298 = sphi 0, %s284
      %s302 = sphi 0, %s302
      %s304 = sphi 0, %s302
      %s305 = sphi 0, %s304
      %s319 = sphi 0, %s305
      %s323 = sphi 0, %s323
      %s325 = sphi 0, %s323
      %s326 = sphi 0, %s325
      %s340 = sphi 0, %s326
      %s344 = sphi 0, %s344
      %s346 = sphi 0, %s344
      %s347 = sphi 0, %s346
      %s361 = sphi 0, %s347
      %s367 = sphi 0, %s369
      %s370 = sphi 0, %s367
      %s371 = sphi 0, %s370
      %s387 = sphi 0, %s371
    $region4: #{tpu_custom_call.1} parent=1 // loop_header_branch
      %30 = sbr.rel (%p28) target = $region8
    $region5: #{tpu_custom_call.1} parent=1 // loop_body
      %s32 = ssub.s32 %s27, 1
      %s33 = ssub.s32 %s27, 2
      %s34 = sadd.s32 %s27, 1
      %s35 = ssub.s32 %s27, %s34
      %p36 = scmp.eq.s32.totalorder %s35, 0
      %s38 = sadd.s32 %s37, 1
      %s39 = scalar_select %p36, %s37, %s38
      %p42 = pneg %p36
      %p43 = scmp.eq.s32.totalorder %s27, 1
      %p44 = por %p42, %p43
      %p45 = scmp.ne.s32.totalorder %s37, %s40
      %p46 = scmp.eq.s32.totalorder %s27, 0
      %p47 = por %p45, %p46
      %p48 = scmp.ne.s32.totalorder %s37, %s40
      %p49 = scmp.eq.s32.totalorder %s32, 1
      %p50 = por %p48, %p49
      %p51 = scmp.ne.s32.totalorder %s40, %s41
      %p52 = scmp.eq.s32.totalorder %s32, 0
      %p53 = por %p51, %p52
      %p54 = scmp.ne.s32.totalorder %s40, %s41
      %p55 = scmp.eq.s32.totalorder %s33, 1
      %p56 = por %p54, %p55
      %p58 = scmp.ne.s32.totalorder %s41, %s57
      %p59 = scmp.eq.s32.totalorder %s33, 0
      %p60 = por %p58, %p59
      %s61 = ssub.s32 %s27, %s34
      %p62 = scmp.eq.s32.totalorder %s61, 0
      %s64 = sadd.s32 %s63, 1
      %s65 = scalar_select %p62, %s63, %s64
      %p68 = pneg %p62
      %p69 = scmp.eq.s32.totalorder %s27, 1
      %p70 = por %p68, %p69
      %p71 = scmp.ne.s32.totalorder %s63, %s66
      %p72 = scmp.eq.s32.totalorder %s27, 0
      %p73 = por %p71, %p72
      %p74 = scmp.ne.s32.totalorder %s63, %s66
      %p75 = scmp.eq.s32.totalorder %s32, 1
      %p76 = por %p74, %p75
      %p77 = scmp.ne.s32.totalorder %s66, %s67
      %p78 = scmp.eq.s32.totalorder %s32, 0
      %p79 = por %p77, %p78
      %p80 = scmp.ne.s32.totalorder %s66, %s67
      %p81 = scmp.eq.s32.totalorder %s33, 1
      %p82 = por %p80, %p81
      %p84 = scmp.ne.s32.totalorder %s67, %s83
      %p85 = scmp.eq.s32.totalorder %s33, 0
      %p86 = por %p84, %p85
      %s87 = ssub.s32 %s27, %s34
      %p88 = scmp.eq.s32.totalorder %s87, 0
      %s90 = sadd.s32 %s89, 1
      %s91 = scalar_select %p88, %s89, %s90
      %p94 = pneg %p88
      %p95 = scmp.eq.s32.totalorder %s27, 1
      %p96 = por %p94, %p95
      %p97 = scmp.ne.s32.totalorder %s89, %s92
      %p98 = scmp.eq.s32.totalorder %s27, 0
      %p99 = por %p97, %p98
      %p100 = scmp.ne.s32.totalorder %s89, %s92
      %p101 = scmp.eq.s32.totalorder %s32, 1
      %p102 = por %p100, %p101
      %p103 = scmp.ne.s32.totalorder %s92, %s93
      %p104 = scmp.eq.s32.totalorder %s32, 0
      %p105 = por %p103, %p104
      %p106 = scmp.ne.s32.totalorder %s92, %s93
      %p107 = scmp.eq.s32.totalorder %s33, 1
      %p108 = por %p106, %p107
      %p110 = scmp.ne.s32.totalorder %s93, %s109
      %p111 = scmp.eq.s32.totalorder %s33, 0
      %p112 = por %p110, %p111
      %s114 = sadd.s32 %s113, 1
      %p117 = scmp.eq.s32.totalorder %s27, 1
      %p118 = scmp.ne.s32.totalorder %s113, %s115
      %p119 = scmp.eq.s32.totalorder %s27, 0
      %p120 = por %p118, %p119
      %p121 = scmp.ne.s32.totalorder %s113, %s115
      %p122 = scmp.eq.s32.totalorder %s32, 1
      %p123 = por %p121, %p122
      %p124 = scmp.ne.s32.totalorder %s115, %s116
      %p125 = scmp.eq.s32.totalorder %s32, 0
      %p126 = por %p124, %p125
      %p127 = scmp.ne.s32.totalorder %s115, %s116
      %p128 = scmp.eq.s32.totalorder %s33, 1
      %p129 = por %p127, %p128
      %p131 = scmp.ne.s32.totalorder %s116, %s130
      %p132 = scmp.eq.s32.totalorder %s33, 0
      %p133 = por %p131, %p132
      %s135 = sadd.s32 %s134, 1
      %p138 = scmp.eq.s32.totalorder %s27, 1
      %p139 = scmp.ne.s32.totalorder %s134, %s136
      %p140 = scmp.eq.s32.totalorder %s27, 0
      %p141 = por %p139, %p140
      %p142 = scmp.ne.s32.totalorder %s134, %s136
      %p143 = scmp.eq.s32.totalorder %s32, 1
      %p144 = por %p142, %p143
      %p145 = scmp.ne.s32.totalorder %s136, %s137
      %p146 = scmp.eq.s32.totalorder %s32, 0
      %p147 = por %p145, %p146
      %p148 = scmp.ne.s32.totalorder %s136, %s137
      %p149 = scmp.eq.s32.totalorder %s33, 1
      %p150 = por %p148, %p149
      %p152 = scmp.ne.s32.totalorder %s137, %s151
      %p153 = scmp.eq.s32.totalorder %s33, 0
      %p154 = por %p152, %p153
      %s156 = sadd.s32 %s155, 1
      %p159 = scmp.eq.s32.totalorder %s27, 1
      %p160 = scmp.ne.s32.totalorder %s155, %s157
      %p161 = scmp.eq.s32.totalorder %s27, 0
      %p162 = por %p160, %p161
      %p163 = scmp.ne.s32.totalorder %s155, %s157
      %p164 = scmp.eq.s32.totalorder %s32, 1
      %p165 = por %p163, %p164
      %p166 = scmp.ne.s32.totalorder %s157, %s158
      %p167 = scmp.eq.s32.totalorder %s32, 0
      %p168 = por %p166, %p167
      %p169 = scmp.ne.s32.totalorder %s157, %s158
      %p170 = scmp.eq.s32.totalorder %s33, 1
      %p171 = por %p169, %p170
      %p173 = scmp.ne.s32.totalorder %s158, %s172
      %p174 = scmp.eq.s32.totalorder %s33, 0
      %p175 = por %p173, %p174
      %s177 = sadd.s32 %s176, 1
      %p180 = scmp.eq.s32.totalorder %s27, 1
      %p181 = scmp.ne.s32.totalorder %s176, %s178
      %p182 = scmp.eq.s32.totalorder %s27, 0
      %p183 = por %p181, %p182
      %p184 = scmp.ne.s32.totalorder %s176, %s178
      %p185 = scmp.eq.s32.totalorder %s32, 1
      %p186 = por %p184, %p185
      %p187 = scmp.ne.s32.totalorder %s178, %s179
      %p188 = scmp.eq.s32.totalorder %s32, 0
      %p189 = por %p187, %p188
      %p190 = scmp.ne.s32.totalorder %s178, %s179
      %p191 = scmp.eq.s32.totalorder %s33, 1
      %p192 = por %p190, %p191
      %p194 = scmp.ne.s32.totalorder %s179, %s193
      %p195 = scmp.eq.s32.totalorder %s33, 0
      %p196 = por %p194, %p195
      %s198 = sadd.s32 %s197, 1
      %p201 = scmp.eq.s32.totalorder %s27, 1
      %p202 = scmp.ne.s32.totalorder %s197, %s199
      %p203 = scmp.eq.s32.totalorder %s27, 0
      %p204 = por %p202, %p203
      %p205 = scmp.ne.s32.totalorder %s197, %s199
      %p206 = scmp.eq.s32.totalorder %s32, 1
      %p207 = por %p205, %p206
      %p208 = scmp.ne.s32.totalorder %s199, %s200
      %p209 = scmp.eq.s32.totalorder %s32, 0
      %p210 = por %p208, %p209
      %p211 = scmp.ne.s32.totalorder %s199, %s200
      %p212 = scmp.eq.s32.totalorder %s33, 1
      %p213 = por %p211, %p212
      %p215 = scmp.ne.s32.totalorder %s200, %s214
      %p216 = scmp.eq.s32.totalorder %s33, 0
      %p217 = por %p215, %p216
      %s219 = sadd.s32 %s218, 1
      %p222 = scmp.eq.s32.totalorder %s27, 1
      %p223 = scmp.ne.s32.totalorder %s218, %s220
      %p224 = scmp.eq.s32.totalorder %s27, 0
      %p225 = por %p223, %p224
      %p226 = scmp.ne.s32.totalorder %s218, %s220
      %p227 = scmp.eq.s32.totalorder %s32, 1
      %p228 = por %p226, %p227
      %p229 = scmp.ne.s32.totalorder %s220, %s221
      %p230 = scmp.eq.s32.totalorder %s32, 0
      %p231 = por %p229, %p230
      %p232 = scmp.ne.s32.totalorder %s220, %s221
      %p233 = scmp.eq.s32.totalorder %s33, 1
      %p234 = por %p232, %p233
      %p236 = scmp.ne.s32.totalorder %s221, %s235
      %p237 = scmp.eq.s32.totalorder %s33, 0
      %p238 = por %p236, %p237
      %s240 = sadd.s32 %s239, 1
      %p243 = scmp.eq.s32.totalorder %s27, 1
      %p244 = scmp.ne.s32.totalorder %s239, %s241
      %p245 = scmp.eq.s32.totalorder %s27, 0
      %p246 = por %p244, %p245
      %p247 = scmp.ne.s32.totalorder %s239, %s241
      %p248 = scmp.eq.s32.totalorder %s32, 1
      %p249 = por %p247, %p248
      %p250 = scmp.ne.s32.totalorder %s241, %s242
      %p251 = scmp.eq.s32.totalorder %s32, 0
      %p252 = por %p250, %p251
      %p253 = scmp.ne.s32.totalorder %s241, %s242
      %p254 = scmp.eq.s32.totalorder %s33, 1
      %p255 = por %p253, %p254
      %p257 = scmp.ne.s32.totalorder %s242, %s256
      %p258 = scmp.eq.s32.totalorder %s33, 0
      %p259 = por %p257, %p258
      %s261 = sadd.s32 %s260, 1
      %p264 = scmp.eq.s32.totalorder %s27, 1
      %p265 = scmp.ne.s32.totalorder %s260, %s262
      %p266 = scmp.eq.s32.totalorder %s27, 0
      %p267 = por %p265, %p266
      %p268 = scmp.ne.s32.totalorder %s260, %s262
      %p269 = scmp.eq.s32.totalorder %s32, 1
      %p270 = por %p268, %p269
      %p271 = scmp.ne.s32.totalorder %s262, %s263
      %p272 = scmp.eq.s32.totalorder %s32, 0
      %p273 = por %p271, %p272
      %p274 = scmp.ne.s32.totalorder %s262, %s263
      %p275 = scmp.eq.s32.totalorder %s33, 1
      %p276 = por %p274, %p275
      %p278 = scmp.ne.s32.totalorder %s263, %s277
      %p279 = scmp.eq.s32.totalorder %s33, 0
      %p280 = por %p278, %p279
      %s282 = sadd.s32 %s281, 1
      %p285 = scmp.eq.s32.totalorder %s27, 1
      %p286 = scmp.ne.s32.totalorder %s281, %s283
      %p287 = scmp.eq.s32.totalorder %s27, 0
      %p288 = por %p286, %p287
      %p289 = scmp.ne.s32.totalorder %s281, %s283
      %p290 = scmp.eq.s32.totalorder %s32, 1
      %p291 = por %p289, %p290
      %p292 = scmp.ne.s32.totalorder %s283, %s284
      %p293 = scmp.eq.s32.totalorder %s32, 0
      %p294 = por %p292, %p293
      %p295 = scmp.ne.s32.totalorder %s283, %s284
      %p296 = scmp.eq.s32.totalorder %s33, 1
      %p297 = por %p295, %p296
      %p299 = scmp.ne.s32.totalorder %s284, %s298
      %p300 = scmp.eq.s32.totalorder %s33, 0
      %p301 = por %p299, %p300
      %s303 = sadd.s32 %s302, 1
      %p306 = scmp.eq.s32.totalorder %s27, 1
      %p307 = scmp.ne.s32.totalorder %s302, %s304
      %p308 = scmp.eq.s32.totalorder %s27, 0
      %p309 = por %p307, %p308
      %p310 = scmp.ne.s32.totalorder %s302, %s304
      %p311 = scmp.eq.s32.totalorder %s32, 1
      %p312 = por %p310, %p311
      %p313 = scmp.ne.s32.totalorder %s304, %s305
      %p314 = scmp.eq.s32.totalorder %s32, 0
      %p315 = por %p313, %p314
      %p316 = scmp.ne.s32.totalorder %s304, %s305
      %p317 = scmp.eq.s32.totalorder %s33, 1
      %p318 = por %p316, %p317
      %p320 = scmp.ne.s32.totalorder %s305, %s319
      %p321 = scmp.eq.s32.totalorder %s33, 0
      %p322 = por %p320, %p321
      %s324 = sadd.s32 %s323, 1
      %p327 = scmp.eq.s32.totalorder %s27, 1
      %p328 = scmp.ne.s32.totalorder %s323, %s325
      %p329 = scmp.eq.s32.totalorder %s27, 0
      %p330 = por %p328, %p329
      %p331 = scmp.ne.s32.totalorder %s323, %s325
      %p332 = scmp.eq.s32.totalorder %s32, 1
      %p333 = por %p331, %p332
      %p334 = scmp.ne.s32.totalorder %s325, %s326
      %p335 = scmp.eq.s32.totalorder %s32, 0
      %p336 = por %p334, %p335
      %p337 = scmp.ne.s32.totalorder %s325, %s326
      %p338 = scmp.eq.s32.totalorder %s33, 1
      %p339 = por %p337, %p338
      %p341 = scmp.ne.s32.totalorder %s326, %s340
      %p342 = scmp.eq.s32.totalorder %s33, 0
      %p343 = por %p341, %p342
      %s345 = sadd.s32 %s344, 1
      %p348 = scmp.eq.s32.totalorder %s27, 1
      %p349 = scmp.ne.s32.totalorder %s344, %s346
      %p350 = scmp.eq.s32.totalorder %s27, 0
      %p351 = por %p349, %p350
      %p352 = scmp.ne.s32.totalorder %s344, %s346
      %p353 = scmp.eq.s32.totalorder %s32, 1
      %p354 = por %p352, %p353
      %p355 = scmp.ne.s32.totalorder %s346, %s347
      %p356 = scmp.eq.s32.totalorder %s32, 0
      %p357 = por %p355, %p356
      %p358 = scmp.ne.s32.totalorder %s346, %s347
      %p359 = scmp.eq.s32.totalorder %s33, 1
      %p360 = por %p358, %p359
      %p362 = scmp.ne.s32.totalorder %s347, %s361
      %p363 = scmp.eq.s32.totalorder %s33, 0
      %p364 = por %p362, %p363
      %s365 = ssub.s32 %s27, %s34
      %p366 = scmp.eq.s32.totalorder %s365, 0
      %s368 = sadd.s32 %s367, 1
      %s369 = scalar_select %p366, %s367, %s368
      %p372 = pneg %p366
      %p373 = scmp.eq.s32.totalorder %s27, 1
      %p374 = por %p372, %p373
      %p375 = scmp.ne.s32.totalorder %s367, %s370
      %p376 = scmp.eq.s32.totalorder %s27, 0
      %p377 = por %p375, %p376
      %p378 = scmp.ne.s32.totalorder %s367, %s370
      %p379 = scmp.eq.s32.totalorder %s32, 1
      %p380 = por %p378, %p379
      %p381 = scmp.ne.s32.totalorder %s370, %s371
      %p382 = scmp.eq.s32.totalorder %s32, 0
      %p383 = por %p381, %p382
      %p384 = scmp.ne.s32.totalorder %s370, %s371
      %p385 = scmp.eq.s32.totalorder %s33, 1
      %p386 = por %p384, %p385
      %p388 = scmp.ne.s32.totalorder %s371, %s387
      %p389 = scmp.eq.s32.totalorder %s33, 0
      %p390 = por %p388, %p389
      %p391 = scmp.le.s32.totalorder 1, %s27
      %p392 = scmp.lt.s32.totalorder %s27, 3
      %p393 = pnand %p391, %p392
      %p394 = pneg %p393
      // Predicated region
      $region9: #{tpu_custom_call.1} parent=5 // pred_check
        _
      $region10: #{tpu_custom_call.1} parent=5 // pred_check_branch
        %396 = sbr.rel (%p393) target = $region12
      $region11: #{tpu_custom_call.1} parent=5 // pred_region
        %s397 = ssub.s32 %s27, 1
        // Predicated region
        $region13: #{tpu_custom_call.1} parent=11 // pred_check
          %p398 = pneg %p126
        $region14: #{tpu_custom_call.1} parent=11 // pred_check_branch
          %400 = sbr.rel (%p398) target = $region16
        $region15: #{tpu_custom_call.1} parent=11 // pred_region
          %s402 = ssub.s32 256, 256
          %403 = vsyncadd [#allocation5], %s402
          %s404 = sshll.u32 [#allocation4], 4
          %s405 = int_to_ptr.vmem [resolvable:$true] %s404
          %410 = dma.hbm_to_vmem [thread:$0]  %s3, 256, %s405, [#allocation5], 128, 128, 8
        $region16: #{tpu_custom_call.1} parent=11 // pred_fallthru
          _
        // Predicated region
        $region17: #{tpu_custom_call.1} parent=11 // pred_check
          %p411 = pneg %p147
        $region18: #{tpu_custom_call.1} parent=11 // pred_check_branch
          %413 = sbr.rel (%p411) target = $region20
        $region19: #{tpu_custom_call.1} parent=11 // pred_region
          _
        $region20: #{tpu_custom_call.1} parent=11 // pred_fallthru
          _
        // Predicated region
        $region21: #{tpu_custom_call.1} parent=11 // pred_check
          %p414 = pneg %p168
        $region22: #{tpu_custom_call.1} parent=11 // pred_check_branch
          %416 = sbr.rel (%p414) target = $region24
        $region23: #{tpu_custom_call.1} parent=11 // pred_region
          %s418 = ssub.s32 256, 256
          %419 = vsyncadd [#allocation5], %s418
          %s420 = sshll.u32 [#allocation6], 4
          %s421 = int_to_ptr.vmem [resolvable:$true] %s420
          %426 = dma.hbm_to_vmem [thread:$0]  %s5, 256, %s421, [#allocation5], 128, 128, 8
        $region24: #{tpu_custom_call.1} parent=11 // pred_fallthru
          _
        // Predicated region
        $region25: #{tpu_custom_call.1} parent=11 // pred_check
          %p427 = pneg %p189
        $region26: #{tpu_custom_call.1} parent=11 // pred_check_branch
          %429 = sbr.rel (%p427) target = $region28
        $region27: #{tpu_custom_call.1} parent=11 // pred_region
          _
        $region28: #{tpu_custom_call.1} parent=11 // pred_fallthru
          _
        // Predicated region
        $region29: #{tpu_custom_call.1} parent=11 // pred_check
          %p430 = pneg %p210
        $region30: #{tpu_custom_call.1} parent=11 // pred_check_branch
          %432 = sbr.rel (%p430) target = $region32
        $region31: #{tpu_custom_call.1} parent=11 // pred_region
          _
        $region32: #{tpu_custom_call.1} parent=11 // pred_fallthru
          _
        // Predicated region
        $region33: #{tpu_custom_call.1} parent=11 // pred_check
          %p433 = pneg %p231
        $region34: #{tpu_custom_call.1} parent=11 // pred_check_branch
          %435 = sbr.rel (%p433) target = $region36
        $region35: #{tpu_custom_call.1} parent=11 // pred_region
          _
        $region36: #{tpu_custom_call.1} parent=11 // pred_fallthru
          _
        // Predicated region
        $region37: #{tpu_custom_call.1} parent=11 // pred_check
          %p436 = pneg %p252
        $region38: #{tpu_custom_call.1} parent=11 // pred_check_branch
          %438 = sbr.rel (%p436) target = $region40
        $region39: #{tpu_custom_call.1} parent=11 // pred_region
          %s440 = ssub.s32 512, 512
          %441 = vsyncadd [#allocation8], %s440
          %s442 = sshll.u32 [#allocation7], 4
          %s443 = int_to_ptr.vmem [resolvable:$true] %s442
          %448 = dma.hbm_to_vmem [thread:$0]  %s9, 512, %s443, [#allocation8], 128, 128, 8
        $region40: #{tpu_custom_call.1} parent=11 // pred_fallthru
          _
        // Predicated region
        $region41: #{tpu_custom_call.1} parent=11 // pred_check
          %p449 = pneg %p273
        $region42: #{tpu_custom_call.1} parent=11 // pred_check_branch
          %451 = sbr.rel (%p449) target = $region44
        $region43: #{tpu_custom_call.1} parent=11 // pred_region
          %s453 = ssub.s32 512, 512
          %454 = vsyncadd [#allocation8], %s453
          %s455 = sshll.u32 [#allocation9], 4
          %s456 = int_to_ptr.vmem [resolvable:$true] %s455
          %461 = dma.hbm_to_vmem [thread:$0]  %s10, 512, %s456, [#allocation8], 128, 128, 8
        $region44: #{tpu_custom_call.1} parent=11 // pred_fallthru
          _
        // Predicated region
        $region45: #{tpu_custom_call.1} parent=11 // pred_check
          %p462 = pneg %p294
        $region46: #{tpu_custom_call.1} parent=11 // pred_check_branch
          %464 = sbr.rel (%p462) target = $region48
        $region47: #{tpu_custom_call.1} parent=11 // pred_region
          %s466 = ssub.s32 512, 512
          %467 = vsyncadd [#allocation11], %s466
          %s468 = sshll.u32 [#allocation10], 4
          %s469 = int_to_ptr.vmem [resolvable:$true] %s468
          %474 = dma.hbm_to_vmem [thread:$0]  %s11, 512, %s469, [#allocation11], 128, 128, 8
        $region48: #{tpu_custom_call.1} parent=11 // pred_fallthru
          _
        // Predicated region
        $region49: #{tpu_custom_call.1} parent=11 // pred_check
          %p475 = pneg %p315
        $region50: #{tpu_custom_call.1} parent=11 // pred_check_branch
          %477 = sbr.rel (%p475) target = $region52
        $region51: #{tpu_custom_call.1} parent=11 // pred_region
          _
        $region52: #{tpu_custom_call.1} parent=11 // pred_fallthru
          _
        // Predicated region
        $region53: #{tpu_custom_call.1} parent=11 // pred_check
          %p478 = pneg %p336
        $region54: #{tpu_custom_call.1} parent=11 // pred_check_branch
          %480 = sbr.rel (%p478) target = $region56
        $region55: #{tpu_custom_call.1} parent=11 // pred_region
          _
        $region56: #{tpu_custom_call.1} parent=11 // pred_fallthru
          _
        // Predicated region
        $region57: #{tpu_custom_call.1} parent=11 // pred_check
          %p481 = pneg %p357
        $region58: #{tpu_custom_call.1} parent=11 // pred_check_branch
          %483 = sbr.rel (%p481) target = $region60
        $region59: #{tpu_custom_call.1} parent=11 // pred_region
          _
        $region60: #{tpu_custom_call.1} parent=11 // pred_fallthru
          _
      $region12: #{tpu_custom_call.1} parent=5 // pred_fallthru
        _
      %p484 = scmp.lt.s32.totalorder %s27, 2
      // Predicated region
      $region61: #{tpu_custom_call.1} parent=5 // pred_check
        %p485 = pneg %p484
      $region62: #{tpu_custom_call.1} parent=5 // pred_check_branch
        %487 = sbr.rel (%p485) target = $region64
      $region63: #{tpu_custom_call.1} parent=5 // pred_region
        // Predicated region
        $region65: #{tpu_custom_call.1} parent=63 // pred_check
          %p488 = pneg %p47
        $region66: #{tpu_custom_call.1} parent=63 // pred_check_branch
          %490 = sbr.rel (%p488) target = $region68
        $region67: #{tpu_custom_call.1} parent=63 // pred_region
          %s491 = smul.u32 8, %s27
          %p492 = scmp.lt.s32.totalorder %s491, 15
          %s493 = scalar_select %p492, %s491, 15
          %s494 = smul.addr %s493, 8
          %s495 = scalar_lea.vmem %s0, %s494
          %s496 = smul.u32 8, %s27
        $region68: #{tpu_custom_call.1} parent=63 // pred_fallthru
          _
        // Predicated region
        $region69: #{tpu_custom_call.1} parent=63 // pred_check
          %p497 = pneg %p73
        $region70: #{tpu_custom_call.1} parent=63 // pred_check_branch
          %499 = sbr.rel (%p497) target = $region72
        $region71: #{tpu_custom_call.1} parent=63 // pred_region
          %s500 = sand.u32 %s63, 1
          %s501 = scalar_lea.sflag [#allocation3], %s500
          %s502 = sand.u32 %s63, 1
          %s503 = smul.addr %s502, 8
          %s504 = scalar_lea.vmem [#allocation2], %s503
          %s506 = ssub.s32 128, 128
          %507 = vsyncadd %s501, %s506
          %s508 = smul.addr %s27, 128
          %s509 = scalar_lea.hbm %s1, %s508
          %s511 = sshll.u32 %s504, 4
          %s512 = int_to_ptr.vmem [resolvable:$true] %s511
          %514 = dma.hbm_to_vmem [thread:$0]  %s509, 128, %s512, %s501
        $region72: #{tpu_custom_call.1} parent=63 // pred_fallthru
          _
        // Predicated region
        $region73: #{tpu_custom_call.1} parent=63 // pred_check
          %p515 = pneg %p99
        $region74: #{tpu_custom_call.1} parent=63 // pred_check_branch
          %517 = sbr.rel (%p515) target = $region76
        $region75: #{tpu_custom_call.1} parent=63 // pred_region
          %p518 = scmp.lt.s32.totalorder %s27, 1
          %s519 = scalar_select %p518, %s27, 1
          %s520 = smul.addr %s519, 8
          %s521 = scalar_lea.vmem %s2, %s520
        $region76: #{tpu_custom_call.1} parent=63 // pred_fallthru
          _
      $region64: #{tpu_custom_call.1} parent=5 // pred_fallthru
        _
      %p522 = scmp.le.s32.totalorder 1, %s27
      %p523 = scmp.lt.s32.totalorder %s27, 3
      %p524 = pnand %p522, %p523
      %p525 = pneg %p524
      // Predicated region
      $region77: #{tpu_custom_call.1} parent=5 // pred_check
        _
      $region78: #{tpu_custom_call.1} parent=5 // pred_check_branch
        %527 = sbr.rel (%p524) target = $region80
      $region79: #{tpu_custom_call.1} parent=5 // pred_region
        %s528 = ssub.s32 %s27, 1
        %s529 = sand.u32 %s66, 1
        %s530 = scalar_lea.sflag [#allocation3], %s529
        %s531 = sand.u32 %s66, 1
        %s532 = smul.addr %s531, 8
        %s533 = scalar_lea.vmem [#allocation2], %s532
        // Predicated region
        $region81: #{tpu_custom_call.1} parent=79 // pred_check
          %p534 = pneg %p79
        $region82: #{tpu_custom_call.1} parent=79 // pred_check_branch
          %536 = sbr.rel (%p534) target = $region84
        $region83: #{tpu_custom_call.1} parent=79 // pred_region
          %537 = dma.done %s530, 128
        $region84: #{tpu_custom_call.1} parent=79 // pred_fallthru
          _
        // Predicated region
        $region85: #{tpu_custom_call.1} parent=79 // pred_check
          %p538 = pneg %p126
        $region86: #{tpu_custom_call.1} parent=79 // pred_check_branch
          %540 = sbr.rel (%p538) target = $region88
        $region87: #{tpu_custom_call.1} parent=79 // pred_region
          %541 = dma.done [#allocation5], 256
        $region88: #{tpu_custom_call.1} parent=79 // pred_fallthru
          _
        // Predicated region
        $region89: #{tpu_custom_call.1} parent=79 // pred_check
          %p542 = pneg %p168
        $region90: #{tpu_custom_call.1} parent=79 // pred_check_branch
          %544 = sbr.rel (%p542) target = $region92
        $region91: #{tpu_custom_call.1} parent=79 // pred_region
          %545 = dma.done [#allocation5], 256
        $region92: #{tpu_custom_call.1} parent=79 // pred_fallthru
          _
        // Predicated region
        $region93: #{tpu_custom_call.1} parent=79 // pred_check
          %p546 = pneg %p252
        $region94: #{tpu_custom_call.1} parent=79 // pred_check_branch
          %548 = sbr.rel (%p546) target = $region96
        $region95: #{tpu_custom_call.1} parent=79 // pred_region
          %549 = dma.done [#allocation8], 512
        $region96: #{tpu_custom_call.1} parent=79 // pred_fallthru
          _
        // Predicated region
        $region97: #{tpu_custom_call.1} parent=79 // pred_check
          %p550 = pneg %p273
        $region98: #{tpu_custom_call.1} parent=79 // pred_check_branch
          %552 = sbr.rel (%p550) target = $region100
        $region99: #{tpu_custom_call.1} parent=79 // pred_region
          %553 = dma.done [#allocation8], 512
        $region100: #{tpu_custom_call.1} parent=79 // pred_fallthru
          _
        // Predicated region
        $region101: #{tpu_custom_call.1} parent=79 // pred_check
          %p554 = pneg %p294
        $region102: #{tpu_custom_call.1} parent=79 // pred_check_branch
          %556 = sbr.rel (%p554) target = $region104
        $region103: #{tpu_custom_call.1} parent=79 // pred_region
          %557 = dma.done [#allocation11], 512
        $region104: #{tpu_custom_call.1} parent=79 // pred_fallthru
          _
        %s558 = smul.u32 8, %s32
        %p559 = scmp.lt.s32.totalorder %s558, 15
        %s560 = scalar_select %p559, %s558, 15
        %s561 = smul.addr %s560, 8
        %s562 = scalar_lea.vmem %s0, %s561
        %p563 = pneg %p53
        %p564 = pneg %p50
        %s565 = sand.u32 %s66, 1
        %s566 = scalar_lea.sflag [#allocation3], %s565
        %s567 = sand.u32 %s66, 1
        %s568 = smul.addr %s567, 8
        %s569 = scalar_lea.vmem [#allocation2], %s568
        %p570 = pneg %p79
        %p571 = pneg %p76
        %p572 = scmp.lt.s32.totalorder %s32, 1
        %s573 = scalar_select %p572, %s32, 1
        %s574 = smul.addr %s573, 8
        %s575 = scalar_lea.vmem %s2, %s574
        %p576 = pneg %p105
        %p577 = pneg %p102
        %p578 = pneg %p126
        %p579 = pneg %p123
        %p580 = pneg %p147
        %p581 = pneg %p144
        %p582 = pneg %p168
        %p583 = pneg %p165
        %p584 = pneg %p189
        %p585 = pneg %p186
        %p586 = pneg %p210
        %p587 = pneg %p207
        %p588 = pneg %p231
        %p589 = pneg %p228
        %p590 = pneg %p252
        %p591 = pneg %p249
        %p592 = pneg %p273
        %p593 = pneg %p270
        %p594 = pneg %p294
        %p595 = pneg %p291
        %p596 = pneg %p315
        %p597 = pneg %p312
        %p598 = pneg %p336
        %p599 = pneg %p333
        %p600 = pneg %p357
        %p601 = pneg %p354
        %p602 = pneg %p383
        %p603 = pneg %p380
        %p604 = scmp.lt.s32.totalorder %s32, 1
        %s605 = scalar_select %p604, %s32, 1
        %s606 = smul.addr %s605, 8
        %s607 = scalar_lea.vmem %s15, %s606
        %s608 = smul.u32 8, %s32
        %p609 = scmp.lt.s32.totalorder %s608, 15
        %s610 = scalar_select %p609, %s608, 15
        %s611 = smul.addr %s610, 8
        %s612 = scalar_lea.vmem %s0, %s611
        %s613 = smul.u32 8, %s32
        %p614 = scmp.lt.s32.totalorder %s32, 1
        %s615 = scalar_select %p614, %s32, 1
        %s616 = smul.addr %s615, 8
        %s617 = scalar_lea.vmem %s2, %s616
        %p618 = scmp.lt.s32.totalorder %s32, 1
        %s619 = scalar_select %p618, %s32, 1
        %s620 = smul.addr %s619, 8
        %s621 = scalar_lea.vmem %s15, %s620
        %v622 = vld [vmem:[%s612] sm:$0xff]
        %v623 = vld [vmem:[%s612 + $0x8] sm:$0xff]
        %v624 = vld [vmem:[%s612 + $0x10] sm:$0xff]
        %v625 = vld [vmem:[%s612 + $0x18] sm:$0xff]
        %v626 = vld [vmem:[%s612 + $0x20] sm:$0xff]
        %v627 = vld [vmem:[%s612 + $0x28] sm:$0xff]
        %v628 = vld [vmem:[%s612 + $0x30] sm:$0xff]
        %v629 = vld [vmem:[%s612 + $0x38] sm:$0xff]
        %v630 = vld [vmem:[#allocation4] sm:$0xff]
        %v631 = vld [vmem:[#allocation4 + $0x8] sm:$0xff]
        %v632 = vld [vmem:[%s4] sm:$0x1]
        %v634 = vlaneseq
        %v635 = vshrl.u32 %v634, 7
        %v636 = vsub.s32 0, %v635
        %v637 = vrot.slane %v632, %v636
        %vm639 = vcmask 130048
        %v641 = vsel %vm639, %v622, 0
        %v644 = vsel %vm639, %v623, 0
        %v647 = vsel %vm639, %v624, 0
        %v650 = vsel %vm639, %v625, 0
        %v653 = vsel %vm639, %v626, 0
        %v656 = vsel %vm639, %v627, 0
        %v659 = vsel %vm639, %v628, 0
        %v662 = vsel %vm639, %v629, 0
        %664 = vmatprep.subr.mxu0 0.0
        %665 = vmatpush1.msra.mxu0 0.0
        %666 = vmatprep.subr.mxu0 0.0
        %667 = vmatpush1.msra.mxu0 0.0
        %668 = vmatprep.subr.mxu0 0.0
        %669 = vmatpush1.msra.mxu0 0.0
        %670 = vmatprep.subr.mxu0 0.0
        %671 = vmatpush1.msra.mxu0 0.0
        %672 = vmatprep.subr.mxu0 0.0
        %673 = vmatpush1.msra.mxu0 0.0
        %674 = vmatprep.subr.mxu0 0.0
        %675 = vmatpush1.msra.mxu0 0.0
        %676 = vmatprep.subr.mxu0 0.0
        %677 = vmatpush1.msra.mxu0 0.0
        %678 = vmatprep.subr.mxu0 0.0
        %679 = vmatpush1.msra.mxu0 0.0
        %680 = vmatprep.subr.mxu0 0.0
        %681 = vmatpush1.msra.mxu0 0.0
        %682 = vmatprep.subr.mxu0 0.0
        %683 = vmatpush1.msra.mxu0 0.0
        %684 = vmatprep.subr.mxu0 0.0
        %685 = vmatpush1.msra.mxu0 0.0
        %686 = vmatprep.subr.mxu0 0.0
        %687 = vmatpush1.msra.mxu0 0.0
        %688 = vmatprep.subr.mxu0 0.0
        %689 = vmatpush1.msra.mxu0 0.0
        %690 = vmatprep.subr.mxu0 0.0
        %691 = vmatpush1.msra.mxu0 0.0
        %692 = vmatprep.subr.mxu0 0.0
        %693 = vmatpush1.msra.mxu0 %v631
        %694 = vmatprep.subr.mxu0 0.0
        %695 = vmatpush1.msra.mxu0 %v630
        %696 = vmatprep.subr.mxu0 0.0
        %697 = vmatpush2.msra.mxu0 0.0
        %698 = vmatprep.subr.mxu0 0.0
        %699 = vmatpush2.msra.mxu0 0.0
        %700 = vmatprep.subr.mxu0 0.0
        %701 = vmatpush2.msra.mxu0 0.0
        %702 = vmatprep.subr.mxu0 0.0
        %703 = vmatpush2.msra.mxu0 0.0
        %704 = vmatprep.subr.mxu0 0.0
        %705 = vmatpush2.msra.mxu0 0.0
        %706 = vmatprep.subr.mxu0 0.0
        %707 = vmatpush2.msra.mxu0 0.0
        %708 = vmatprep.subr.mxu0 0.0
        %709 = vmatpush2.msra.mxu0 0.0
        %710 = vmatprep.subr.mxu0 0.0
        %711 = vmatpush2.msra.mxu0 0.0
        %712 = vmatprep.subr.mxu0 0.0
        %713 = vmatpush2.msra.mxu0 0.0
        %714 = vmatprep.subr.mxu0 0.0
        %715 = vmatpush2.msra.mxu0 0.0
        %716 = vmatprep.subr.mxu0 0.0
        %717 = vmatpush2.msra.mxu0 0.0
        %718 = vmatprep.subr.mxu0 0.0
        %719 = vmatpush2.msra.mxu0 0.0
        %720 = vmatprep.subr.mxu0 0.0
        %721 = vmatpush2.msra.mxu0 0.0
        %722 = vmatprep.subr.mxu0 0.0
        %723 = vmatpush2.msra.mxu0 0.0
        %724 = vmatprep.subr.mxu0 0.0
        %725 = vmatpush2.msra.mxu0 0.0
        %726 = vmatprep.subr.mxu0 0.0
        %727 = vmatpush2.msra.mxu0 0.0
        %728 = vmatprep.mubr.f32.mxu0 0.0
        %729 = vmatmul.mubr.f32.gmra.mxu0 %v641
        %v730 = vpop.f32.mrf.mxu0
        %v731 = vadd.f32 %v637, %v730
        %v732 = vpop.f32.mrf.mxu0
        %733 = vmatprep.mubr.f32.mxu0 0.0
        %734 = vmatmul.mubr.f32.gmra.mxu0 %v644
        %v735 = vpop.f32.mrf.mxu0
        %v736 = vadd.f32 %v637, %v735
        %v737 = vpop.f32.mrf.mxu0
        %738 = vmatprep.mubr.f32.mxu0 0.0
        %739 = vmatmul.mubr.f32.gmra.mxu0 %v647
        %v740 = vpop.f32.mrf.mxu0
        %v741 = vadd.f32 %v637, %v740
        %v742 = vpop.f32.mrf.mxu0
        %743 = vmatprep.mubr.f32.mxu0 0.0
        %744 = vmatmul.mubr.f32.gmra.mxu0 %v650
        %v745 = vpop.f32.mrf.mxu0
        %v746 = vadd.f32 %v637, %v745
        %v747 = vpop.f32.mrf.mxu0
        %748 = vmatprep.mubr.f32.mxu0 0.0
        %749 = vmatmul.mubr.f32.gmra.mxu0 %v653
        %v750 = vpop.f32.mrf.mxu0
        %v751 = vadd.f32 %v637, %v750
        %v752 = vpop.f32.mrf.mxu0
        %753 = vmatprep.mubr.f32.mxu0 0.0
        %754 = vmatmul.mubr.f32.gmra.mxu0 %v656
        %v755 = vpop.f32.mrf.mxu0
        %v756 = vadd.f32 %v637, %v755
        %v757 = vpop.f32.mrf.mxu0
        %758 = vmatprep.mubr.f32.mxu0 0.0
        %759 = vmatmul.mubr.f32.gmra.mxu0 %v659
        %v760 = vpop.f32.mrf.mxu0
        %v761 = vadd.f32 %v637, %v760
        %v762 = vpop.f32.mrf.mxu0
        %763 = vmatprep.mubr.f32.mxu0 0.0
        %764 = vmatmul.mubr.f32.gmra.mxu0 %v662
        %v765 = vpop.f32.mrf.mxu0
        %v766 = vadd.f32 %v637, %v765
        %v767 = vpop.f32.mrf.mxu0
        %768 = vdwg.mxu0
        %v769 = vld [vmem:[%s533] sm:$0xff]
        %v770 = vld [vmem:[#allocation6] sm:$0xff]
        %v771 = vld [vmem:[#allocation6 + $0x8] sm:$0xff]
        %v772 = vld [vmem:[%s6] sm:$0x1]
        %v774 = vlaneseq
        %v775 = vshrl.u32 %v774, 7
        %v776 = vsub.s32 0, %v775
        %v777 = vrot.slane %v772, %v776
        %v780 = vsel %vm639, %v769, 0
        %782 = vmatprep.subr.mxu0 0.0
        %783 = vmatpush1.msra.mxu0 0.0
        %784 = vmatprep.subr.mxu0 0.0
        %785 = vmatpush1.msra.mxu0 0.0
        %786 = vmatprep.subr.mxu0 0.0
        %787 = vmatpush1.msra.mxu0 0.0
        %788 = vmatprep.subr.mxu0 0.0
        %789 = vmatpush1.msra.mxu0 0.0
        %790 = vmatprep.subr.mxu0 0.0
        %791 = vmatpush1.msra.mxu0 0.0
        %792 = vmatprep.subr.mxu0 0.0
        %793 = vmatpush1.msra.mxu0 0.0
        %794 = vmatprep.subr.mxu0 0.0
        %795 = vmatpush1.msra.mxu0 0.0
        %796 = vmatprep.subr.mxu0 0.0
        %797 = vmatpush1.msra.mxu0 0.0
        %798 = vmatprep.subr.mxu0 0.0
        %799 = vmatpush1.msra.mxu0 0.0
        %800 = vmatprep.subr.mxu0 0.0
        %801 = vmatpush1.msra.mxu0 0.0
        %802 = vmatprep.subr.mxu0 0.0
        %803 = vmatpush1.msra.mxu0 0.0
        %804 = vmatprep.subr.mxu0 0.0
        %805 = vmatpush1.msra.mxu0 0.0
        %806 = vmatprep.subr.mxu0 0.0
        %807 = vmatpush1.msra.mxu0 0.0
        %808 = vmatprep.subr.mxu0 0.0
        %809 = vmatpush1.msra.mxu0 0.0
        %810 = vmatprep.subr.mxu0 0.0
        %811 = vmatpush1.msra.mxu0 %v771
        %812 = vmatprep.subr.mxu0 0.0
        %813 = vmatpush1.msra.mxu0 %v770
        %814 = vmatprep.subr.mxu0 0.0
        %815 = vmatpush2.msra.mxu0 0.0
        %816 = vmatprep.subr.mxu0 0.0
        %817 = vmatpush2.msra.mxu0 0.0
        %818 = vmatprep.subr.mxu0 0.0
        %819 = vmatpush2.msra.mxu0 0.0
        %820 = vmatprep.subr.mxu0 0.0
        %821 = vmatpush2.msra.mxu0 0.0
        %822 = vmatprep.subr.mxu0 0.0
        %823 = vmatpush2.msra.mxu0 0.0
        %824 = vmatprep.subr.mxu0 0.0
        %825 = vmatpush2.msra.mxu0 0.0
        %826 = vmatprep.subr.mxu0 0.0
        %827 = vmatpush2.msra.mxu0 0.0
        %828 = vmatprep.subr.mxu0 0.0
        %829 = vmatpush2.msra.mxu0 0.0
        %830 = vmatprep.subr.mxu0 0.0
        %831 = vmatpush2.msra.mxu0 0.0
        %832 = vmatprep.subr.mxu0 0.0
        %833 = vmatpush2.msra.mxu0 0.0
        %834 = vmatprep.subr.mxu0 0.0
        %835 = vmatpush2.msra.mxu0 0.0
        %836 = vmatprep.subr.mxu0 0.0
        %837 = vmatpush2.msra.mxu0 0.0
        %838 = vmatprep.subr.mxu0 0.0
        %839 = vmatpush2.msra.mxu0 0.0
        %840 = vmatprep.subr.mxu0 0.0
        %841 = vmatpush2.msra.mxu0 0.0
        %842 = vmatprep.subr.mxu0 0.0
        %843 = vmatpush2.msra.mxu0 0.0
        %844 = vmatprep.subr.mxu0 0.0
        %845 = vmatpush2.msra.mxu0 0.0
        %846 = vmatprep.mubr.f32.mxu0 0.0
        %847 = vmatmul.mubr.f32.gmra.mxu0 %v780
        %v848 = vpop.f32.mrf.mxu0
        %v849 = vadd.f32 %v777, %v848
        %v850 = vpop.f32.mrf.mxu0
        %851 = vdwg.mxu0
        %v852 = vld [vmem:[%s7] sm:$0xff]
        %v853 = vld [vmem:[%s7 + $0x8] sm:$0xff]
        %v854 = vld [vmem:[%s7 + $0x10] sm:$0xff]
        %v855 = vld [vmem:[%s7 + $0x18] sm:$0xff]
        %vm856 = vcmask 261120
        %v858 = vsel %vm856, %v849, 0
        %860 = vmatprep.subr.mxu0 0.0
        %861 = vmatpush1.msra.mxu0 0.0
        %862 = vmatprep.subr.mxu0 0.0
        %863 = vmatpush1.msra.mxu0 0.0
        %864 = vmatprep.subr.mxu0 0.0
        %865 = vmatpush1.msra.mxu0 0.0
        %866 = vmatprep.subr.mxu0 0.0
        %867 = vmatpush1.msra.mxu0 0.0
        %868 = vmatprep.subr.mxu0 0.0
        %869 = vmatpush1.msra.mxu0 0.0
        %870 = vmatprep.subr.mxu0 0.0
        %871 = vmatpush1.msra.mxu0 0.0
        %872 = vmatprep.subr.mxu0 0.0
        %873 = vmatpush1.msra.mxu0 0.0
        %874 = vmatprep.subr.mxu0 0.0
        %875 = vmatpush1.msra.mxu0 0.0
        %876 = vmatprep.subr.mxu0 0.0
        %877 = vmatpush1.msra.mxu0 0.0
        %878 = vmatprep.subr.mxu0 0.0
        %879 = vmatpush1.msra.mxu0 0.0
        %880 = vmatprep.subr.mxu0 0.0
        %881 = vmatpush1.msra.mxu0 0.0
        %882 = vmatprep.subr.mxu0 0.0
        %883 = vmatpush1.msra.mxu0 0.0
        %884 = vmatprep.subr.mxu0 0.0
        %885 = vmatpush1.msra.mxu0 %v855
        %886 = vmatprep.subr.mxu0 0.0
        %887 = vmatpush1.msra.mxu0 %v854
        %888 = vmatprep.subr.mxu0 0.0
        %889 = vmatpush1.msra.mxu0 %v853
        %890 = vmatprep.subr.mxu0 0.0
        %891 = vmatpush1.msra.mxu0 %v852
        %892 = vmatprep.subr.mxu0 0.0
        %893 = vmatpush2.msra.mxu0 0.0
        %894 = vmatprep.subr.mxu0 0.0
        %895 = vmatpush2.msra.mxu0 0.0
        %896 = vmatprep.subr.mxu0 0.0
        %897 = vmatpush2.msra.mxu0 0.0
        %898 = vmatprep.subr.mxu0 0.0
        %899 = vmatpush2.msra.mxu0 0.0
        %900 = vmatprep.subr.mxu0 0.0
        %901 = vmatpush2.msra.mxu0 0.0
        %902 = vmatprep.subr.mxu0 0.0
        %903 = vmatpush2.msra.mxu0 0.0
        %904 = vmatprep.subr.mxu0 0.0
        %905 = vmatpush2.msra.mxu0 0.0
        %906 = vmatprep.subr.mxu0 0.0
        %907 = vmatpush2.msra.mxu0 0.0
        %908 = vmatprep.subr.mxu0 0.0
        %909 = vmatpush2.msra.mxu0 0.0
        %910 = vmatprep.subr.mxu0 0.0
        %911 = vmatpush2.msra.mxu0 0.0
        %912 = vmatprep.subr.mxu0 0.0
        %913 = vmatpush2.msra.mxu0 0.0
        %914 = vmatprep.subr.mxu0 0.0
        %915 = vmatpush2.msra.mxu0 0.0
        %916 = vmatprep.subr.mxu0 0.0
        %917 = vmatpush2.msra.mxu0 0.0
        %918 = vmatprep.subr.mxu0 0.0
        %919 = vmatpush2.msra.mxu0 0.0
        %920 = vmatprep.subr.mxu0 0.0
        %921 = vmatpush2.msra.mxu0 0.0
        %922 = vmatprep.subr.mxu0 0.0
        %923 = vmatpush2.msra.mxu0 0.0
        %924 = vmatprep.mubr.f32.mxu0 0.0
        %925 = vmatmul.mubr.f32.gmra.mxu0 %v858
        %v926 = vpop.f32.mrf.mxu0
        %v927 = vadd.f32 0.0, %v926
        %v928 = vpop.f32.mrf.mxu0
        %929 = vdwg.mxu0
        %v930 = vld [vmem:[%s8] sm:$0xff]
        %v931 = vld [vmem:[%s8 + $0x8] sm:$0xff]
        %v932 = vld [vmem:[%s8 + $0x10] sm:$0xff]
        %v933 = vld [vmem:[%s8 + $0x18] sm:$0xff]
        %v934 = vld [vmem:[%s8 + $0x20] sm:$0xff]
        %v935 = vld [vmem:[%s8 + $0x28] sm:$0xff]
        %v936 = vld [vmem:[%s8 + $0x30] sm:$0xff]
        %v937 = vld [vmem:[%s8 + $0x38] sm:$0xff]
        %vm938 = vcmask 523264
        %v940 = vsel %vm938, %v927, 0
        %942 = vmatprep.subr.mxu0 0.0
        %943 = vmatpush1.msra.mxu0 0.0
        %944 = vmatprep.subr.mxu0 0.0
        %945 = vmatpush1.msra.mxu0 0.0
        %946 = vmatprep.subr.mxu0 0.0
        %947 = vmatpush1.msra.mxu0 0.0
        %948 = vmatprep.subr.mxu0 0.0
        %949 = vmatpush1.msra.mxu0 0.0
        %950 = vmatprep.subr.mxu0 0.0
        %951 = vmatpush1.msra.mxu0 0.0
        %952 = vmatprep.subr.mxu0 0.0
        %953 = vmatpush1.msra.mxu0 0.0
        %954 = vmatprep.subr.mxu0 0.0
        %955 = vmatpush1.msra.mxu0 0.0
        %956 = vmatprep.subr.mxu0 0.0
        %957 = vmatpush1.msra.mxu0 0.0
        %958 = vmatprep.subr.mxu0 0.0
        %959 = vmatpush1.msra.mxu0 %v937
        %960 = vmatprep.subr.mxu0 0.0
        %961 = vmatpush1.msra.mxu0 %v936
        %962 = vmatprep.subr.mxu0 0.0
        %963 = vmatpush1.msra.mxu0 %v935
        %964 = vmatprep.subr.mxu0 0.0
        %965 = vmatpush1.msra.mxu0 %v934
        %966 = vmatprep.subr.mxu0 0.0
        %967 = vmatpush1.msra.mxu0 %v933
        %968 = vmatprep.subr.mxu0 0.0
        %969 = vmatpush1.msra.mxu0 %v932
        %970 = vmatprep.subr.mxu0 0.0
        %971 = vmatpush1.msra.mxu0 %v931
        %972 = vmatprep.subr.mxu0 0.0
        %973 = vmatpush1.msra.mxu0 %v930
        %974 = vmatprep.subr.mxu0 0.0
        %975 = vmatpush2.msra.mxu0 0.0
        %976 = vmatprep.subr.mxu0 0.0
        %977 = vmatpush2.msra.mxu0 0.0
        %978 = vmatprep.subr.mxu0 0.0
        %979 = vmatpush2.msra.mxu0 0.0
        %980 = vmatprep.subr.mxu0 0.0
        %981 = vmatpush2.msra.mxu0 0.0
        %982 = vmatprep.subr.mxu0 0.0
        %983 = vmatpush2.msra.mxu0 0.0
        %984 = vmatprep.subr.mxu0 0.0
        %985 = vmatpush2.msra.mxu0 0.0
        %986 = vmatprep.subr.mxu0 0.0
        %987 = vmatpush2.msra.mxu0 0.0
        %988 = vmatprep.subr.mxu0 0.0
        %989 = vmatpush2.msra.mxu0 0.0
        %990 = vmatprep.subr.mxu0 0.0
        %991 = vmatpush2.msra.mxu0 0.0
        %992 = vmatprep.subr.mxu0 0.0
        %993 = vmatpush2.msra.mxu0 0.0
        %994 = vmatprep.subr.mxu0 0.0
        %995 = vmatpush2.msra.mxu0 0.0
        %996 = vmatprep.subr.mxu0 0.0
        %997 = vmatpush2.msra.mxu0 0.0
        %998 = vmatprep.subr.mxu0 0.0
        %999 = vmatpush2.msra.mxu0 0.0
        %1000 = vmatprep.subr.mxu0 0.0
        %1001 = vmatpush2.msra.mxu0 0.0
        %1002 = vmatprep.subr.mxu0 0.0
        %1003 = vmatpush2.msra.mxu0 0.0
        %1004 = vmatprep.subr.mxu0 0.0
        %1005 = vmatpush2.msra.mxu0 0.0
        %1006 = vmatprep.mubr.f32.mxu0 0.0
        %1007 = vmatmul.mubr.f32.gmra.mxu0 %v940
        %v1008 = vpop.f32.mrf.mxu0
        %v1009 = vadd.f32 0.0, %v1008
        %v1010 = vpop.f32.mrf.mxu0
        %1011 = vdwg.mxu0
        %v1013 = vcombine.high %v1009, %v1009
        %v1015 = vunpack.c.l.s4 1966171168
        %v1016 = vunpack.c.0.s8 %v1015
        %v1017 = vlaneseq
        %v1018 = vshrl.u32 %v1017, 7
        %v1019 = vsub.s32 %v1016, %v1018
        %v1020 = vrot.slane %v1009, %v1019
        %v1022 = vunpack.c.l.s4 1966171168
        %v1023 = vunpack.c.0.s8 %v1022
        %v1024 = vlaneseq
        %v1025 = vshrl.u32 %v1024, 7
        %v1026 = vsub.s32 %v1023, %v1025
        %v1027 = vrot.slane %v1013, %v1026
        %v1028 = vcombine.high %v1020, %v1020
        %v1029 = vcombine.high %v1027, %v1027
        %v1031 = vunpack.c.l.s4 1966171168
        %v1032 = vunpack.c.0.s8 %v1031
        %v1033 = vlaneseq
        %v1034 = vshrl.u32 %v1033, 7
        %v1035 = vsub.s32 %v1032, %v1034
        %v1036 = vrot.slane %v1020, %v1035
        %v1038 = vunpack.c.l.s4 1966171168
        %v1039 = vunpack.c.0.s8 %v1038
        %v1040 = vlaneseq
        %v1041 = vshrl.u32 %v1040, 7
        %v1042 = vsub.s32 %v1039, %v1041
        %v1043 = vrot.slane %v1027, %v1042
        %v1045 = vunpack.c.l.s4 1966171168
        %v1046 = vunpack.c.0.s8 %v1045
        %v1047 = vlaneseq
        %v1048 = vshrl.u32 %v1047, 7
        %v1049 = vsub.s32 %v1046, %v1048
        %v1050 = vrot.slane %v1028, %v1049
        %v1052 = vunpack.c.l.s4 1966171168
        %v1053 = vunpack.c.0.s8 %v1052
        %v1054 = vlaneseq
        %v1055 = vshrl.u32 %v1054, 7
        %v1056 = vsub.s32 %v1053, %v1055
        %v1057 = vrot.slane %v1029, %v1056
        %v1058 = vcombine.high %v1036, %v1036
        %v1059 = vcombine.high %v1043, %v1043
        %v1060 = vcombine.high %v1050, %v1050
        %v1061 = vcombine.high %v1057, %v1057
        %v1062 = vlaneseq
        %v1063 = vshrl.u32 %v1062, 7
        %v1064 = vsub.s32 0, %v1063
        %v1065 = vrot.slane %v1036, %v1064
        %v1066 = vlaneseq
        %v1067 = vshrl.u32 %v1066, 7
        %v1068 = vsub.s32 0, %v1067
        %v1069 = vrot.slane %v1050, %v1068
        %v1070 = vlaneseq
        %v1071 = vshrl.u32 %v1070, 7
        %v1072 = vsub.s32 0, %v1071
        %v1073 = vrot.slane %v1058, %v1072
        %v1074 = vlaneseq
        %v1075 = vshrl.u32 %v1074, 7
        %v1076 = vsub.s32 0, %v1075
        %v1077 = vrot.slane %v1060, %v1076
        %v1078 = vlaneseq
        %v1079 = vshrl.u32 %v1078, 7
        %v1080 = vsub.s32 0, %v1079
        %v1081 = vrot.slane %v1043, %v1080
        %v1082 = vlaneseq
        %v1083 = vshrl.u32 %v1082, 7
        %v1084 = vsub.s32 0, %v1083
        %v1085 = vrot.slane %v1057, %v1084
        %v1086 = vlaneseq
        %v1087 = vshrl.u32 %v1086, 7
        %v1088 = vsub.s32 0, %v1087
        %v1089 = vrot.slane %v1059, %v1088
        %v1090 = vlaneseq
        %v1091 = vshrl.u32 %v1090, 7
        %v1092 = vsub.s32 0, %v1091
        %v1093 = vrot.slane %v1061, %v1092
        %v1102 = vmul.f32 %v731, %v1065
        %v1103 = vmul.f32 %v736, %v1069
        %v1104 = vmul.f32 %v741, %v1073
        %v1105 = vmul.f32 %v746, %v1077
        %v1106 = vmul.f32 %v751, %v1081
        %v1107 = vmul.f32 %v756, %v1085
        %v1108 = vmul.f32 %v761, %v1089
        %v1109 = vmul.f32 %v766, %v1093
        %v1110 = vsel %vm856, %v1102, 0.0
        %1111 = vadd.xlane.f32.xlu0 %v1110
        %v1112 = vpop.xlane.xlu0 %1111
        %v1113 = vsel %vm856, %v1103, 0.0
        %1114 = vadd.xlane.f32.xlu0 %v1113
        %v1115 = vpop.xlane.xlu0 %1114
        %v1116 = vsel %vm856, %v1104, 0.0
        %1117 = vadd.xlane.f32.xlu0 %v1116
        %v1118 = vpop.xlane.xlu0 %1117
        %v1119 = vsel %vm856, %v1105, 0.0
        %1120 = vadd.xlane.f32.xlu0 %v1119
        %v1121 = vpop.xlane.xlu0 %1120
        %v1122 = vsel %vm856, %v1106, 0.0
        %1123 = vadd.xlane.f32.xlu0 %v1122
        %v1124 = vpop.xlane.xlu0 %1123
        %v1125 = vsel %vm856, %v1107, 0.0
        %1126 = vadd.xlane.f32.xlu0 %v1125
        %v1127 = vpop.xlane.xlu0 %1126
        %v1128 = vsel %vm856, %v1108, 0.0
        %1129 = vadd.xlane.f32.xlu0 %v1128
        %v1130 = vpop.xlane.xlu0 %1129
        %v1131 = vsel %vm856, %v1109, 0.0
        %1132 = vadd.xlane.f32.xlu0 %v1131
        %v1133 = vpop.xlane.xlu0 %1132
        %v1134 = vmul.f32 %v1112, 0.125
        %v1135 = vmul.f32 %v1115, 0.125
        %v1136 = vmul.f32 %v1118, 0.125
        %v1137 = vmul.f32 %v1121, 0.125
        %v1138 = vmul.f32 %v1124, 0.125
        %v1139 = vmul.f32 %v1127, 0.125
        %v1140 = vmul.f32 %v1130, 0.125
        %v1141 = vmul.f32 %v1133, 0.125
        %v1150 = vlaneseq
        %v1151 = vand.u32 %v1150, 127
        %v1152 = vlaneseq
        %v1153 = vshrl.u32 %v1152, 7
        %v1154 = vsub.s32 %v1151, %v1153
        %v1155 = vrot.slane %v1134, %v1154
        %v1156 = vlaneseq
        %v1157 = vshrl.u32 %v1156, 7
        %v1158 = vsub.s32 %v1151, %v1157
        %v1159 = vrot.slane %v1135, %v1158
        %v1160 = vlaneseq
        %v1161 = vshrl.u32 %v1160, 7
        %v1162 = vsub.s32 %v1151, %v1161
        %v1163 = vrot.slane %v1136, %v1162
        %v1164 = vlaneseq
        %v1165 = vshrl.u32 %v1164, 7
        %v1166 = vsub.s32 %v1151, %v1165
        %v1167 = vrot.slane %v1137, %v1166
        %v1168 = vlaneseq
        %v1169 = vshrl.u32 %v1168, 7
        %v1170 = vsub.s32 %v1151, %v1169
        %v1171 = vrot.slane %v1138, %v1170
        %v1172 = vlaneseq
        %v1173 = vshrl.u32 %v1172, 7
        %v1174 = vsub.s32 %v1151, %v1173
        %v1175 = vrot.slane %v1139, %v1174
        %v1176 = vlaneseq
        %v1177 = vshrl.u32 %v1176, 7
        %v1178 = vsub.s32 %v1151, %v1177
        %v1179 = vrot.slane %v1140, %v1178
        %v1180 = vlaneseq
        %v1181 = vshrl.u32 %v1180, 7
        %v1182 = vsub.s32 %v1151, %v1181
        %v1183 = vrot.slane %v1141, %v1182
        %vm1184 = vcmask 1041409
        %v1185 = vsel %vm1184, %v1159, %v1155
        %vm1186 = vcmask 1042434
        %v1187 = vsel %vm1186, %v1163, %v1185
        %vm1188 = vcmask 1043459
        %v1189 = vsel %vm1188, %v1167, %v1187
        %vm1190 = vcmask 1044484
        %v1191 = vsel %vm1190, %v1171, %v1189
        %vm1192 = vcmask 1045509
        %v1193 = vsel %vm1192, %v1175, %v1191
        %vm1194 = vcmask 1046534
        %v1195 = vsel %vm1194, %v1179, %v1193
        %vm1196 = vcmask 1047559
        %v1197 = vsel %vm1196, %v1183, %v1195
        %vm1199 = vcmask 64512
        %v1200 = vsel %vm1199, %v1197, -inf
        %1201 = vmax.xlane.f32.xlu0 %v1200
        %v1202 = vpop.xlane.xlu0 %1201
        %v1204 = vlaneseq
        %v1205 = vshrl.u32 %v1204, 7
        %v1206 = vsub.s32 0, %v1205
        %v1207 = vrot.slane %v1202, %v1206
        %v1208 = vlaneseq
        %v1209 = vshrl.u32 %v1208, 7
        %v1210 = vsub.s32 1, %v1209
        %v1211 = vrot.slane %v1202, %v1210
        %v1212 = vlaneseq
        %v1213 = vshrl.u32 %v1212, 7
        %v1214 = vsub.s32 2, %v1213
        %v1215 = vrot.slane %v1202, %v1214
        %v1216 = vlaneseq
        %v1217 = vshrl.u32 %v1216, 7
        %v1218 = vsub.s32 3, %v1217
        %v1219 = vrot.slane %v1202, %v1218
        %v1220 = vlaneseq
        %v1221 = vshrl.u32 %v1220, 7
        %v1222 = vsub.s32 4, %v1221
        %v1223 = vrot.slane %v1202, %v1222
        %v1224 = vlaneseq
        %v1225 = vshrl.u32 %v1224, 7
        %v1226 = vsub.s32 5, %v1225
        %v1227 = vrot.slane %v1202, %v1226
        %v1228 = vlaneseq
        %v1229 = vshrl.u32 %v1228, 7
        %v1230 = vsub.s32 6, %v1229
        %v1231 = vrot.slane %v1202, %v1230
        %v1232 = vlaneseq
        %v1233 = vshrl.u32 %v1232, 7
        %v1234 = vsub.s32 7, %v1233
        %v1235 = vrot.slane %v1202, %v1234
        %v1244 = vsub.f32 %v1134, %v1207
        %v1245 = vsub.f32 %v1135, %v1211
        %v1246 = vsub.f32 %v1136, %v1215
        %v1247 = vsub.f32 %v1137, %v1219
        %v1248 = vsub.f32 %v1138, %v1223
        %v1249 = vsub.f32 %v1139, %v1227
        %v1250 = vsub.f32 %v1140, %v1231
        %v1251 = vsub.f32 %v1141, %v1235
        %v1252 = vmul.f32 %v1244, 1.442695
        %v1253 = vpow.pop %v1252
        %v1254 = vmul.f32 %v1245, 1.442695
        %v1255 = vpow.pop %v1254
        %v1256 = vmul.f32 %v1246, 1.442695
        %v1257 = vpow.pop %v1256
        %v1258 = vmul.f32 %v1247, 1.442695
        %v1259 = vpow.pop %v1258
        %v1260 = vmul.f32 %v1248, 1.442695
        %v1261 = vpow.pop %v1260
        %v1262 = vmul.f32 %v1249, 1.442695
        %v1263 = vpow.pop %v1262
        %v1264 = vmul.f32 %v1250, 1.442695
        %v1265 = vpow.pop %v1264
        %v1266 = vmul.f32 %v1251, 1.442695
        %v1267 = vpow.pop %v1266
        %1276 = vset.pattern.permute.xlu0 0
        %1277 = vperm.xlu0 %1276, %v1253
        %v1278 = vpop.permute.xlu0 %1277
        %1279 = vset.pattern.permute.xlu0 0
        %1280 = vperm.xlu0 %1279, %v1255
        %v1281 = vpop.permute.xlu0 %1280
        %1282 = vset.pattern.permute.xlu0 0
        %1283 = vperm.xlu0 %1282, %v1257
        %v1284 = vpop.permute.xlu0 %1283
        %1285 = vset.pattern.permute.xlu0 0
        %1286 = vperm.xlu0 %1285, %v1259
        %v1287 = vpop.permute.xlu0 %1286
        %1288 = vset.pattern.permute.xlu0 0
        %1289 = vperm.xlu0 %1288, %v1261
        %v1290 = vpop.permute.xlu0 %1289
        %1291 = vset.pattern.permute.xlu0 0
        %1292 = vperm.xlu0 %1291, %v1263
        %v1293 = vpop.permute.xlu0 %1292
        %1294 = vset.pattern.permute.xlu0 0
        %1295 = vperm.xlu0 %1294, %v1265
        %v1296 = vpop.permute.xlu0 %1295
        %1297 = vset.pattern.permute.xlu0 0
        %1298 = vperm.xlu0 %1297, %v1267
        %v1299 = vpop.permute.xlu0 %1298
        %v1300 = vlaneseq
        %v1301 = vshrl.u32 %v1300, 7
        %v1302 = vsub.s32 %v1151, %v1301
        %v1303 = vrot.slane %v1278, %v1302
        %v1304 = vlaneseq
        %v1305 = vshrl.u32 %v1304, 7
        %v1306 = vsub.s32 %v1151, %v1305
        %v1307 = vrot.slane %v1281, %v1306
        %v1308 = vlaneseq
        %v1309 = vshrl.u32 %v1308, 7
        %v1310 = vsub.s32 %v1151, %v1309
        %v1311 = vrot.slane %v1284, %v1310
        %v1312 = vlaneseq
        %v1313 = vshrl.u32 %v1312, 7
        %v1314 = vsub.s32 %v1151, %v1313
        %v1315 = vrot.slane %v1287, %v1314
        %v1316 = vlaneseq
        %v1317 = vshrl.u32 %v1316, 7
        %v1318 = vsub.s32 %v1151, %v1317
        %v1319 = vrot.slane %v1290, %v1318
        %v1320 = vlaneseq
        %v1321 = vshrl.u32 %v1320, 7
        %v1322 = vsub.s32 %v1151, %v1321
        %v1323 = vrot.slane %v1293, %v1322
        %v1324 = vlaneseq
        %v1325 = vshrl.u32 %v1324, 7
        %v1326 = vsub.s32 %v1151, %v1325
        %v1327 = vrot.slane %v1296, %v1326
        %v1328 = vlaneseq
        %v1329 = vshrl.u32 %v1328, 7
        %v1330 = vsub.s32 %v1151, %v1329
        %v1331 = vrot.slane %v1299, %v1330
        %v1332 = vsel %vm1184, %v1307, %v1303
        %v1333 = vsel %vm1186, %v1311, %v1332
        %v1334 = vsel %vm1188, %v1315, %v1333
        %v1335 = vsel %vm1190, %v1319, %v1334
        %v1336 = vsel %vm1192, %v1323, %v1335
        %v1337 = vsel %vm1194, %v1327, %v1336
        %v1338 = vsel %vm1196, %v1331, %v1337
        %v1340 = vsel %vm1199, %v1338, 0.0
        %1341 = vadd.xlane.f32.xlu0 %v1340
        %v1342 = vpop.xlane.xlu0 %1341
        %v1344 = vlaneseq
        %v1345 = vshrl.u32 %v1344, 7
        %v1346 = vsub.s32 0, %v1345
        %v1347 = vrot.slane %v1342, %v1346
        %v1348 = vlaneseq
        %v1349 = vshrl.u32 %v1348, 7
        %v1350 = vsub.s32 1, %v1349
        %v1351 = vrot.slane %v1342, %v1350
        %v1352 = vlaneseq
        %v1353 = vshrl.u32 %v1352, 7
        %v1354 = vsub.s32 2, %v1353
        %v1355 = vrot.slane %v1342, %v1354
        %v1356 = vlaneseq
        %v1357 = vshrl.u32 %v1356, 7
        %v1358 = vsub.s32 3, %v1357
        %v1359 = vrot.slane %v1342, %v1358
        %v1360 = vlaneseq
        %v1361 = vshrl.u32 %v1360, 7
        %v1362 = vsub.s32 4, %v1361
        %v1363 = vrot.slane %v1342, %v1362
        %v1364 = vlaneseq
        %v1365 = vshrl.u32 %v1364, 7
        %v1366 = vsub.s32 5, %v1365
        %v1367 = vrot.slane %v1342, %v1366
        %v1368 = vlaneseq
        %v1369 = vshrl.u32 %v1368, 7
        %v1370 = vsub.s32 6, %v1369
        %v1371 = vrot.slane %v1342, %v1370
        %v1372 = vlaneseq
        %v1373 = vshrl.u32 %v1372, 7
        %v1374 = vsub.s32 7, %v1373
        %v1375 = vrot.slane %v1342, %v1374
        %v1384 = vrcp.pop %v1347
        %v1385 = vmul.f32 %v1253, %v1384
        %v1386 = vrcp.pop %v1351
        %v1387 = vmul.f32 %v1255, %v1386
        %v1388 = vrcp.pop %v1355
        %v1389 = vmul.f32 %v1257, %v1388
        %v1390 = vrcp.pop %v1359
        %v1391 = vmul.f32 %v1259, %v1390
        %v1392 = vrcp.pop %v1363
        %v1393 = vmul.f32 %v1261, %v1392
        %v1394 = vrcp.pop %v1367
        %v1395 = vmul.f32 %v1263, %v1394
        %v1396 = vrcp.pop %v1371
        %v1397 = vmul.f32 %v1265, %v1396
        %v1398 = vrcp.pop %v1375
        %v1399 = vmul.f32 %v1267, %v1398
        %1401 = vset.pattern.permute.xlu0 0
        %1402 = vperm.xlu0 %1401, %v1385
        %v1403 = vpop.permute.xlu0 %1402
        %1406 = vset.pattern.permute.xlu0 0
        %1407 = vperm.xlu0 %1406, %v1387
        %v1408 = vpop.permute.xlu0 %1407
        %1411 = vset.pattern.permute.xlu0 0
        %1412 = vperm.xlu0 %1411, %v1389
        %v1413 = vpop.permute.xlu0 %1412
        %1416 = vset.pattern.permute.xlu0 0
        %1417 = vperm.xlu0 %1416, %v1391
        %v1418 = vpop.permute.xlu0 %1417
        %1421 = vset.pattern.permute.xlu0 0
        %1422 = vperm.xlu0 %1421, %v1393
        %v1423 = vpop.permute.xlu0 %1422
        %1426 = vset.pattern.permute.xlu0 0
        %1427 = vperm.xlu0 %1426, %v1395
        %v1428 = vpop.permute.xlu0 %1427
        %1431 = vset.pattern.permute.xlu0 0
        %1432 = vperm.xlu0 %1431, %v1397
        %v1433 = vpop.permute.xlu0 %1432
        %1436 = vset.pattern.permute.xlu0 0
        %1437 = vperm.xlu0 %1436, %v1399
        %v1438 = vpop.permute.xlu0 %1437
        %v1440 = vmul.f32 %v731, %v1403
        %v1441 = vmul.f32 %v736, %v1408
        %v1442 = vmul.f32 %v741, %v1413
        %v1443 = vmul.f32 %v746, %v1418
        %v1444 = vmul.f32 %v751, %v1423
        %v1445 = vmul.f32 %v756, %v1428
        %v1446 = vmul.f32 %v761, %v1433
        %v1447 = vmul.f32 %v766, %v1438
        %v1448 = vsel %vm856, %v1440, 0.0
        %v1449 = vrot.slane %v1448, 4
        %v1450 = vadd.f32 %v1448, %v1449
        %v1451 = vrot.slane %v1450, 2
        %v1452 = vadd.f32 %v1450, %v1451
        %v1453 = vrot.slane %v1452, 1
        %v1454 = vadd.f32 %v1452, %v1453
        %v1455 = vsel %vm856, %v1441, 0.0
        %v1456 = vrot.slane %v1455, 4
        %v1457 = vadd.f32 %v1455, %v1456
        %v1458 = vrot.slane %v1457, 2
        %v1459 = vadd.f32 %v1457, %v1458
        %v1460 = vrot.slane %v1459, 1
        %v1461 = vadd.f32 %v1459, %v1460
        %v1462 = vsel %vm856, %v1442, 0.0
        %v1463 = vrot.slane %v1462, 4
        %v1464 = vadd.f32 %v1462, %v1463
        %v1465 = vrot.slane %v1464, 2
        %v1466 = vadd.f32 %v1464, %v1465
        %v1467 = vrot.slane %v1466, 1
        %v1468 = vadd.f32 %v1466, %v1467
        %v1469 = vsel %vm856, %v1443, 0.0
        %v1470 = vrot.slane %v1469, 4
        %v1471 = vadd.f32 %v1469, %v1470
        %v1472 = vrot.slane %v1471, 2
        %v1473 = vadd.f32 %v1471, %v1472
        %v1474 = vrot.slane %v1473, 1
        %v1475 = vadd.f32 %v1473, %v1474
        %v1476 = vsel %vm856, %v1444, 0.0
        %v1477 = vrot.slane %v1476, 4
        %v1478 = vadd.f32 %v1476, %v1477
        %v1479 = vrot.slane %v1478, 2
        %v1480 = vadd.f32 %v1478, %v1479
        %v1481 = vrot.slane %v1480, 1
        %v1482 = vadd.f32 %v1480, %v1481
        %v1483 = vsel %vm856, %v1445, 0.0
        %v1484 = vrot.slane %v1483, 4
        %v1485 = vadd.f32 %v1483, %v1484
        %v1486 = vrot.slane %v1485, 2
        %v1487 = vadd.f32 %v1485, %v1486
        %v1488 = vrot.slane %v1487, 1
        %v1489 = vadd.f32 %v1487, %v1488
        %v1490 = vsel %vm856, %v1446, 0.0
        %v1491 = vrot.slane %v1490, 4
        %v1492 = vadd.f32 %v1490, %v1491
        %v1493 = vrot.slane %v1492, 2
        %v1494 = vadd.f32 %v1492, %v1493
        %v1495 = vrot.slane %v1494, 1
        %v1496 = vadd.f32 %v1494, %v1495
        %v1497 = vsel %vm856, %v1447, 0.0
        %v1498 = vrot.slane %v1497, 4
        %v1499 = vadd.f32 %v1497, %v1498
        %v1500 = vrot.slane %v1499, 2
        %v1501 = vadd.f32 %v1499, %v1500
        %v1502 = vrot.slane %v1501, 1
        %v1503 = vadd.f32 %v1501, %v1502
        %v1504 = vld [vmem:[#allocation7] sm:$0xff]
        %v1505 = vld [vmem:[#allocation7 + $0x8] sm:$0xff]
        %v1506 = vld [vmem:[#allocation7 + $0x10] sm:$0xff]
        %v1507 = vld [vmem:[#allocation7 + $0x18] sm:$0xff]
        %v1516 = vsel %vm1184, %v1461, %v1454
        %v1517 = vsel %vm1186, %v1468, %v1516
        %v1518 = vsel %vm1188, %v1475, %v1517
        %v1519 = vsel %vm1190, %v1482, %v1518
        %v1520 = vsel %vm1192, %v1489, %v1519
        %v1521 = vsel %vm1194, %v1496, %v1520
        %v1522 = vsel %vm1196, %v1503, %v1521
        %v1523 = vsel %vm856, %v1522, 0
        %1525 = vmatprep.subr.mxu0 0.0
        %1526 = vmatpush1.msra.mxu0 0.0
        %1527 = vmatprep.subr.mxu0 0.0
        %1528 = vmatpush1.msra.mxu0 0.0
        %1529 = vmatprep.subr.mxu0 0.0
        %1530 = vmatpush1.msra.mxu0 0.0
        %1531 = vmatprep.subr.mxu0 0.0
        %1532 = vmatpush1.msra.mxu0 0.0
        %1533 = vmatprep.subr.mxu0 0.0
        %1534 = vmatpush1.msra.mxu0 0.0
        %1535 = vmatprep.subr.mxu0 0.0
        %1536 = vmatpush1.msra.mxu0 0.0
        %1537 = vmatprep.subr.mxu0 0.0
        %1538 = vmatpush1.msra.mxu0 0.0
        %1539 = vmatprep.subr.mxu0 0.0
        %1540 = vmatpush1.msra.mxu0 0.0
        %1541 = vmatprep.subr.mxu0 0.0
        %1542 = vmatpush1.msra.mxu0 0.0
        %1543 = vmatprep.subr.mxu0 0.0
        %1544 = vmatpush1.msra.mxu0 0.0
        %1545 = vmatprep.subr.mxu0 0.0
        %1546 = vmatpush1.msra.mxu0 0.0
        %1547 = vmatprep.subr.mxu0 0.0
        %1548 = vmatpush1.msra.mxu0 0.0
        %1549 = vmatprep.subr.mxu0 0.0
        %1550 = vmatpush1.msra.mxu0 %v1507
        %1551 = vmatprep.subr.mxu0 0.0
        %1552 = vmatpush1.msra.mxu0 %v1506
        %1553 = vmatprep.subr.mxu0 0.0
        %1554 = vmatpush1.msra.mxu0 %v1505
        %1555 = vmatprep.subr.mxu0 0.0
        %1556 = vmatpush1.msra.mxu0 %v1504
        %1557 = vmatprep.subr.mxu0 0.0
        %1558 = vmatpush2.msra.mxu0 0.0
        %1559 = vmatprep.subr.mxu0 0.0
        %1560 = vmatpush2.msra.mxu0 0.0
        %1561 = vmatprep.subr.mxu0 0.0
        %1562 = vmatpush2.msra.mxu0 0.0
        %1563 = vmatprep.subr.mxu0 0.0
        %1564 = vmatpush2.msra.mxu0 0.0
        %1565 = vmatprep.subr.mxu0 0.0
        %1566 = vmatpush2.msra.mxu0 0.0
        %1567 = vmatprep.subr.mxu0 0.0
        %1568 = vmatpush2.msra.mxu0 0.0
        %1569 = vmatprep.subr.mxu0 0.0
        %1570 = vmatpush2.msra.mxu0 0.0
        %1571 = vmatprep.subr.mxu0 0.0
        %1572 = vmatpush2.msra.mxu0 0.0
        %1573 = vmatprep.subr.mxu0 0.0
        %1574 = vmatpush2.msra.mxu0 0.0
        %1575 = vmatprep.subr.mxu0 0.0
        %1576 = vmatpush2.msra.mxu0 0.0
        %1577 = vmatprep.subr.mxu0 0.0
        %1578 = vmatpush2.msra.mxu0 0.0
        %1579 = vmatprep.subr.mxu0 0.0
        %1580 = vmatpush2.msra.mxu0 0.0
        %1581 = vmatprep.subr.mxu0 0.0
        %1582 = vmatpush2.msra.mxu0 0.0
        %1583 = vmatprep.subr.mxu0 0.0
        %1584 = vmatpush2.msra.mxu0 0.0
        %1585 = vmatprep.subr.mxu0 0.0
        %1586 = vmatpush2.msra.mxu0 0.0
        %1587 = vmatprep.subr.mxu0 0.0
        %1588 = vmatpush2.msra.mxu0 0.0
        %1589 = vmatprep.mubr.f32.mxu0 0.0
        %1590 = vmatmul.mubr.f32.gmra.mxu0 %v1523
        %v1591 = vpop.f32.mrf.mxu0
        %v1592 = vadd.f32 0.0, %v1591
        %v1593 = vpop.f32.mrf.mxu0
        %1594 = vdwg.mxu0
        %v1595 = vld [vmem:[#allocation9] sm:$0xff]
        %v1596 = vld [vmem:[#allocation9 + $0x8] sm:$0xff]
        %v1597 = vld [vmem:[#allocation9 + $0x10] sm:$0xff]
        %v1598 = vld [vmem:[#allocation9 + $0x18] sm:$0xff]
        %v1599 = vld [vmem:[#allocation10] sm:$0xff]
        %v1600 = vld [vmem:[#allocation10 + $0x8] sm:$0xff]
        %v1601 = vld [vmem:[#allocation10 + $0x10] sm:$0xff]
        %v1602 = vld [vmem:[#allocation10 + $0x18] sm:$0xff]
        %1603 = vmatprep.subr.mxu0 0.0
        %1604 = vmatpush1.msra.mxu0 0.0
        %1605 = vmatprep.subr.mxu0 0.0
        %1606 = vmatpush1.msra.mxu0 0.0
        %1607 = vmatprep.subr.mxu0 0.0
        %1608 = vmatpush1.msra.mxu0 0.0
        %1609 = vmatprep.subr.mxu0 0.0
        %1610 = vmatpush1.msra.mxu0 0.0
        %1611 = vmatprep.subr.mxu0 0.0
        %1612 = vmatpush1.msra.mxu0 0.0
        %1613 = vmatprep.subr.mxu0 0.0
        %1614 = vmatpush1.msra.mxu0 0.0
        %1615 = vmatprep.subr.mxu0 0.0
        %1616 = vmatpush1.msra.mxu0 0.0
        %1617 = vmatprep.subr.mxu0 0.0
        %1618 = vmatpush1.msra.mxu0 0.0
        %1619 = vmatprep.subr.mxu0 0.0
        %1620 = vmatpush1.msra.mxu0 0.0
        %1621 = vmatprep.subr.mxu0 0.0
        %1622 = vmatpush1.msra.mxu0 0.0
        %1623 = vmatprep.subr.mxu0 0.0
        %1624 = vmatpush1.msra.mxu0 0.0
        %1625 = vmatprep.subr.mxu0 0.0
        %1626 = vmatpush1.msra.mxu0 0.0
        %1627 = vmatprep.subr.mxu0 0.0
        %1628 = vmatpush1.msra.mxu0 %v1602
        %1629 = vmatprep.subr.mxu0 0.0
        %1630 = vmatpush1.msra.mxu0 %v1601
        %1631 = vmatprep.subr.mxu0 0.0
        %1632 = vmatpush1.msra.mxu0 %v1600
        %1633 = vmatprep.subr.mxu0 0.0
        %1634 = vmatpush1.msra.mxu0 %v1599
        %1635 = vmatprep.subr.mxu0 0.0
        %1636 = vmatpush2.msra.mxu0 0.0
        %1637 = vmatprep.subr.mxu0 0.0
        %1638 = vmatpush2.msra.mxu0 0.0
        %1639 = vmatprep.subr.mxu0 0.0
        %1640 = vmatpush2.msra.mxu0 0.0
        %1641 = vmatprep.subr.mxu0 0.0
        %1642 = vmatpush2.msra.mxu0 0.0
        %1643 = vmatprep.subr.mxu0 0.0
        %1644 = vmatpush2.msra.mxu0 0.0
        %1645 = vmatprep.subr.mxu0 0.0
        %1646 = vmatpush2.msra.mxu0 0.0
        %1647 = vmatprep.subr.mxu0 0.0
        %1648 = vmatpush2.msra.mxu0 0.0
        %1649 = vmatprep.subr.mxu0 0.0
        %1650 = vmatpush2.msra.mxu0 0.0
        %1651 = vmatprep.subr.mxu0 0.0
        %1652 = vmatpush2.msra.mxu0 0.0
        %1653 = vmatprep.subr.mxu0 0.0
        %1654 = vmatpush2.msra.mxu0 0.0
        %1655 = vmatprep.subr.mxu0 0.0
        %1656 = vmatpush2.msra.mxu0 0.0
        %1657 = vmatprep.subr.mxu0 0.0
        %1658 = vmatpush2.msra.mxu0 0.0
        %1659 = vmatprep.subr.mxu0 0.0
        %1660 = vmatpush2.msra.mxu0 0.0
        %1661 = vmatprep.subr.mxu0 0.0
        %1662 = vmatpush2.msra.mxu0 0.0
        %1663 = vmatprep.subr.mxu0 0.0
        %1664 = vmatpush2.msra.mxu0 0.0
        %1665 = vmatprep.subr.mxu0 0.0
        %1666 = vmatpush2.msra.mxu0 0.0
        %1667 = vmatprep.mubr.f32.mxu0 0.0
        %1668 = vmatmul.mubr.f32.gmra.mxu0 %v858
        %v1669 = vpop.f32.mrf.mxu0
        %v1670 = vadd.f32 0.0, %v1669
        %v1671 = vpop.f32.mrf.mxu0
        %1672 = vdwg.mxu0
        %v1674 = vsel %vm856, %v1592, 0
        %1676 = vmatprep.subr.mxu0 0.0
        %1677 = vmatpush1.msra.mxu0 0.0
        %1678 = vmatprep.subr.mxu0 0.0
        %1679 = vmatpush1.msra.mxu0 0.0
        %1680 = vmatprep.subr.mxu0 0.0
        %1681 = vmatpush1.msra.mxu0 0.0
        %1682 = vmatprep.subr.mxu0 0.0
        %1683 = vmatpush1.msra.mxu0 0.0
        %1684 = vmatprep.subr.mxu0 0.0
        %1685 = vmatpush1.msra.mxu0 0.0
        %1686 = vmatprep.subr.mxu0 0.0
        %1687 = vmatpush1.msra.mxu0 0.0
        %1688 = vmatprep.subr.mxu0 0.0
        %1689 = vmatpush1.msra.mxu0 0.0
        %1690 = vmatprep.subr.mxu0 0.0
        %1691 = vmatpush1.msra.mxu0 0.0
        %1692 = vmatprep.subr.mxu0 0.0
        %1693 = vmatpush1.msra.mxu0 0.0
        %1694 = vmatprep.subr.mxu0 0.0
        %1695 = vmatpush1.msra.mxu0 0.0
        %1696 = vmatprep.subr.mxu0 0.0
        %1697 = vmatpush1.msra.mxu0 0.0
        %1698 = vmatprep.subr.mxu0 0.0
        %1699 = vmatpush1.msra.mxu0 0.0
        %1700 = vmatprep.subr.mxu0 0.0
        %1701 = vmatpush1.msra.mxu0 %v1598
        %1702 = vmatprep.subr.mxu0 0.0
        %1703 = vmatpush1.msra.mxu0 %v1597
        %1704 = vmatprep.subr.mxu0 0.0
        %1705 = vmatpush1.msra.mxu0 %v1596
        %1706 = vmatprep.subr.mxu0 0.0
        %1707 = vmatpush1.msra.mxu0 %v1595
        %1708 = vmatprep.subr.mxu0 0.0
        %1709 = vmatpush2.msra.mxu0 0.0
        %1710 = vmatprep.subr.mxu0 0.0
        %1711 = vmatpush2.msra.mxu0 0.0
        %1712 = vmatprep.subr.mxu0 0.0
        %1713 = vmatpush2.msra.mxu0 0.0
        %1714 = vmatprep.subr.mxu0 0.0
        %1715 = vmatpush2.msra.mxu0 0.0
        %1716 = vmatprep.subr.mxu0 0.0
        %1717 = vmatpush2.msra.mxu0 0.0
        %1718 = vmatprep.subr.mxu0 0.0
        %1719 = vmatpush2.msra.mxu0 0.0
        %1720 = vmatprep.subr.mxu0 0.0
        %1721 = vmatpush2.msra.mxu0 0.0
        %1722 = vmatprep.subr.mxu0 0.0
        %1723 = vmatpush2.msra.mxu0 0.0
        %1724 = vmatprep.subr.mxu0 0.0
        %1725 = vmatpush2.msra.mxu0 0.0
        %1726 = vmatprep.subr.mxu0 0.0
        %1727 = vmatpush2.msra.mxu0 0.0
        %1728 = vmatprep.subr.mxu0 0.0
        %1729 = vmatpush2.msra.mxu0 0.0
        %1730 = vmatprep.subr.mxu0 0.0
        %1731 = vmatpush2.msra.mxu0 0.0
        %1732 = vmatprep.subr.mxu0 0.0
        %1733 = vmatpush2.msra.mxu0 0.0
        %1734 = vmatprep.subr.mxu0 0.0
        %1735 = vmatpush2.msra.mxu0 0.0
        %1736 = vmatprep.subr.mxu0 0.0
        %1737 = vmatpush2.msra.mxu0 0.0
        %1738 = vmatprep.subr.mxu0 0.0
        %1739 = vmatpush2.msra.mxu0 0.0
        %1740 = vmatprep.mubr.f32.mxu0 0.0
        %1741 = vmatmul.mubr.f32.gmra.mxu0 %v1674
        %v1742 = vpop.f32.mrf.mxu0
        %v1743 = vadd.f32 %v1670, %v1742
        %v1744 = vpop.f32.mrf.mxu0
        %1745 = vdwg.mxu0
        %v1746 = vld [vmem:[%s12] sm:$0x1]
        %v1748 = vlaneseq
        %v1749 = vshrl.u32 %v1748, 7
        %v1750 = vsub.s32 0, %v1749
        %v1751 = vrot.slane %v1746, %v1750
        %v1753 = vadd.f32 %v1743, %v1751
        %v1754 = vmax.f32 %v1753, 0.0
        %v1755 = vld [vmem:[%s13] sm:$0xff]
        %v1756 = vld [vmem:[%s13 + $0x8] sm:$0xff]
        %v1757 = vld [vmem:[%s13 + $0x10] sm:$0xff]
        %v1758 = vld [vmem:[%s13 + $0x18] sm:$0xff]
        %v1759 = vld [vmem:[%s14] sm:$0x1]
        %v1761 = vlaneseq
        %v1762 = vshrl.u32 %v1761, 7
        %v1763 = vsub.s32 0, %v1762
        %v1764 = vrot.slane %v1759, %v1763
        %v1767 = vsel %vm856, %v1754, 0
        %1769 = vmatprep.subr.mxu0 0.0
        %1770 = vmatpush1.msra.mxu0 0.0
        %1771 = vmatprep.subr.mxu0 0.0
        %1772 = vmatpush1.msra.mxu0 0.0
        %1773 = vmatprep.subr.mxu0 0.0
        %1774 = vmatpush1.msra.mxu0 0.0
        %1775 = vmatprep.subr.mxu0 0.0
        %1776 = vmatpush1.msra.mxu0 0.0
        %1777 = vmatprep.subr.mxu0 0.0
        %1778 = vmatpush1.msra.mxu0 0.0
        %1779 = vmatprep.subr.mxu0 0.0
        %1780 = vmatpush1.msra.mxu0 0.0
        %1781 = vmatprep.subr.mxu0 0.0
        %1782 = vmatpush1.msra.mxu0 0.0
        %1783 = vmatprep.subr.mxu0 0.0
        %1784 = vmatpush1.msra.mxu0 0.0
        %1785 = vmatprep.subr.mxu0 0.0
        %1786 = vmatpush1.msra.mxu0 0.0
        %1787 = vmatprep.subr.mxu0 0.0
        %1788 = vmatpush1.msra.mxu0 0.0
        %1789 = vmatprep.subr.mxu0 0.0
        %1790 = vmatpush1.msra.mxu0 0.0
        %1791 = vmatprep.subr.mxu0 0.0
        %1792 = vmatpush1.msra.mxu0 0.0
        %1793 = vmatprep.subr.mxu0 0.0
        %1794 = vmatpush1.msra.mxu0 %v1758
        %1795 = vmatprep.subr.mxu0 0.0
        %1796 = vmatpush1.msra.mxu0 %v1757
        %1797 = vmatprep.subr.mxu0 0.0
        %1798 = vmatpush1.msra.mxu0 %v1756
        %1799 = vmatprep.subr.mxu0 0.0
        %1800 = vmatpush1.msra.mxu0 %v1755
        %1801 = vmatprep.subr.mxu0 0.0
        %1802 = vmatpush2.msra.mxu0 0.0
        %1803 = vmatprep.subr.mxu0 0.0
        %1804 = vmatpush2.msra.mxu0 0.0
        %1805 = vmatprep.subr.mxu0 0.0
        %1806 = vmatpush2.msra.mxu0 0.0
        %1807 = vmatprep.subr.mxu0 0.0
        %1808 = vmatpush2.msra.mxu0 0.0
        %1809 = vmatprep.subr.mxu0 0.0
        %1810 = vmatpush2.msra.mxu0 0.0
        %1811 = vmatprep.subr.mxu0 0.0
        %1812 = vmatpush2.msra.mxu0 0.0
        %1813 = vmatprep.subr.mxu0 0.0
        %1814 = vmatpush2.msra.mxu0 0.0
        %1815 = vmatprep.subr.mxu0 0.0
        %1816 = vmatpush2.msra.mxu0 0.0
        %1817 = vmatprep.subr.mxu0 0.0
        %1818 = vmatpush2.msra.mxu0 0.0
        %1819 = vmatprep.subr.mxu0 0.0
        %1820 = vmatpush2.msra.mxu0 0.0
        %1821 = vmatprep.subr.mxu0 0.0
        %1822 = vmatpush2.msra.mxu0 0.0
        %1823 = vmatprep.subr.mxu0 0.0
        %1824 = vmatpush2.msra.mxu0 0.0
        %1825 = vmatprep.subr.mxu0 0.0
        %1826 = vmatpush2.msra.mxu0 0.0
        %1827 = vmatprep.subr.mxu0 0.0
        %1828 = vmatpush2.msra.mxu0 0.0
        %1829 = vmatprep.subr.mxu0 0.0
        %1830 = vmatpush2.msra.mxu0 0.0
        %1831 = vmatprep.subr.mxu0 0.0
        %1832 = vmatpush2.msra.mxu0 0.0
        %1833 = vmatprep.mubr.f32.mxu0 0.0
        %1834 = vmatmul.mubr.f32.gmra.mxu0 %v1767
        %v1835 = vpop.f32.mrf.mxu0
        %v1836 = vadd.f32 %v1764, %v1835
        %v1837 = vpop.f32.mrf.mxu0
        %1838 = vdwg.mxu0
        %v1839 = vld [vmem:[%s617] sm:$0xff]
        %v1840 = vadd.f32 %v1836, %v1839
        %v1841 = vsel %vm1199, %v1840, -inf
        %1842 = vmax.xlane.f32.xlu0 %v1841
        %v1843 = vpop.xlane.xlu0 %1842
        %v1844 = vsub.f32 %v1840, %v1843
        %v1845 = vmul.f32 %v1844, 1.442695
        %v1846 = vpow.pop %v1845
        %v1847 = vsel %vm1199, %v1846, 0.0
        %1848 = vadd.xlane.f32.xlu0 %v1847
        %v1849 = vpop.xlane.xlu0 %1848
        %v1850 = vrcp.pop %v1849
        %v1851 = vmul.f32 %v1846, %v1850
        %1852 = vst.msk [vmem:[%s621] sm:$0xff] %vm1199, %v1851
        %p1853 = scmp.lt.s32.totalorder %s32, 1
        %s1854 = scalar_select %p1853, %s32, 1
        %s1855 = smul.addr %s1854, 8
        %s1856 = scalar_lea.vmem %s15, %s1855
        // Predicated region
        $region105: #{tpu_custom_call.1} parent=79 // pred_check
          %p1857 = pneg %p380
        $region106: #{tpu_custom_call.1} parent=79 // pred_check_branch
          %1859 = sbr.rel (%p1857) target = $region108
        $region107: #{tpu_custom_call.1} parent=79 // pred_region
          _
        $region108: #{tpu_custom_call.1} parent=79 // pred_fallthru
          _
      $region80: #{tpu_custom_call.1} parent=5 // pred_fallthru
        _
      %p1860 = scmp.le.s32.totalorder 2, %s27
      // Predicated region
      $region109: #{tpu_custom_call.1} parent=5 // pred_check
        %p1861 = pneg %p1860
      $region110: #{tpu_custom_call.1} parent=5 // pred_check_branch
        %1863 = sbr.rel (%p1861) target = $region112
      $region111: #{tpu_custom_call.1} parent=5 // pred_region
        %s1864 = ssub.s32 %s27, 2
        // Predicated region
        $region113: #{tpu_custom_call.1} parent=111 // pred_check
          %p1865 = pneg %p386
        $region114: #{tpu_custom_call.1} parent=111 // pred_check_branch
          %1867 = sbr.rel (%p1865) target = $region116
        $region115: #{tpu_custom_call.1} parent=111 // pred_region
          %p1868 = scmp.lt.s32.totalorder %s33, 1
          %s1869 = scalar_select %p1868, %s33, 1
          %s1870 = smul.addr %s1869, 8
          %s1871 = scalar_lea.vmem %s15, %s1870
        $region116: #{tpu_custom_call.1} parent=111 // pred_fallthru
          _
      $region112: #{tpu_custom_call.1} parent=5 // pred_fallthru
        _
    $region6: #{tpu_custom_call.1} parent=1 // loop_footer
      %s31 = sadd.s32 1, %s27
    $region7: #{tpu_custom_call.1} parent=1 // loop_footer_branch
      %26 = sbr.rel target = $region3
    $region8: #{tpu_custom_call.1} parent=1 // loop_exit
      _
    %1872 = vsyncpa [#allocation3], 1
    %s1873 = scalar_lea.sflag [#allocation3], 1
    %1874 = vsyncpa %s1873, 1
    %1875 = vsyncpa [#allocation5], 1
    %1876 = vsyncpa [#allocation8], 1
    %1877 = vsyncpa [#allocation11], 1

</llo_original>
